<compile_context>
chip_gen: v6e
topology: v6e:2x2x1
jax: 0.10.0
libtpu: 0.0.40
codegen_flags: <defaults>
</compile_context>

<pallas_src>
import numpy as np
import jax
import jax.numpy as jnp
from jax.experimental import pallas as pl
from jax.experimental.pallas import tpu as pltpu

# ------------------------------------------------------------------
# Problem sizes (small, consistent with the PyTorch module)
# ------------------------------------------------------------------
BN = 2          # batch
C = 4           # in_planes
OUTP = 8        # out_planes
H = W = 16      # input spatial size
DEV = 12        # device-id length (device_fc* have 12 input channels)

KPOOL, SPOOL = 3, 2                       # MaxPool2d(kernel=3, stride=2, ceil_mode=True)
HM = -(-(H - KPOOL) // SPOOL) + 1         # pooled height (ceil mode) = 8
WM = -(-(W - KPOOL) // SPOOL) + 1         # pooled width  = 8
KH = KW = 6                               # conv1 kernel
PAD = 3                                   # conv1 padding
HP = HM + 2 * PAD                         # zero-padded pooled height = 14
WP = WM + 2 * PAD                         # zero-padded pooled width  = 14
HO = HP - KH + 1                          # conv output height = 9
WO = WP - KW + 1                          # conv output width  = 9

G = BN * C                                # fused batch*channel groups   = 8
GW = G * W                                # fused input lanes            = 128
WPP = 16                                  # per-group padded-pool width, lane aligned
GWPP = G * WPP                            # fused padded-pool lanes      = 128
NO = BN * OUTP                            # fused output channels        = 16
OUT_LANES = NO * WO                       # fused output lanes           = 144
CO = BN * C * OUTP                        # fused device_fc1 width       = 64
OO = BN * OUTP * OUTP                     # fused device_fc2 width       = 128
P2OFF = 128                               # aligned lane offset of fc2 block in p12
P12 = P2OFF + OO                          # fused fc1+fc2 width          = 256
KIM = KH * GWPP                           # im2row contraction length    = 768

HIGH = jax.lax.Precision.HIGHEST          # reference only


def _dot(a, b):
    # bf16 x bf16 with f32 accumulation: a single MXU pass.
    return jnp.dot(a, b, preferred_element_type=jnp.float32)


# ------------------------------------------------------------------
# Pallas kernel: ONE grid step processes the whole batch
# ------------------------------------------------------------------
def dca_kernel(x_ref, dev_ref, gsum_e1_ref, w12t_ref, g1e2_ref, g2eg_ref,
               rowsel_ref, colsel_ref, wtoep_ref, bias_ref, out_ref,
               ppad_ref, im2row_ref):
    xf = x_ref[...]                                        # (H, GW) = (16, 128) f32
    x_bf = xf.astype(jnp.bfloat16)                         # MXU operand

    # ---- fc / gamma chain: 4 M=1 dots (was 8), 3-dot data-dependent path ----
    colsum = jnp.sum(xf, axis=0, keepdims=True)            # (1, 128) f32
    # gsum_e1 fuses group-sum, 1/(H*W) and duplication-over-OUTP
    avg_rep = _dot(colsum.astype(jnp.bfloat16), gsum_e1_ref[...])   # (1, 64)
    d_bf = dev_ref[...].astype(jnp.bfloat16)               # (1, 24)
    p12 = _dot(d_bf, w12t_ref[...])                        # (1, 256) f32
    p1 = p12[:, :CO]                                       # (1, 64)  device_fc1
    p2 = p12[:, P2OFF:]                                    # (1, 128) device_fc2 (aligned)
    f1 = _dot((avg_rep * p1).astype(jnp.bfloat16), g1e2_ref[...])   # (1, 128)
    f1 = jnp.where(f1 >= 0.0, f1, 0.1 * f1)                # LeakyReLU(0.1), f32
    z = _dot((f1 * p2).astype(jnp.bfloat16), g2eg_ref[...])         # (1, 144)
    gamma_b = pl.reciprocal(1.0 + jnp.exp(-z), approx=True)         # sigmoid (EUP)

    # ---- MaxPool2d(3,2,ceil) + zero-pad(3): max commuted with the selectors --
    colmax = _dot(x_bf, colsel_ref[0])                     # (16, 128) f32
    for dj in range(1, KPOOL):
        colmax = jnp.maximum(colmax, _dot(x_bf, colsel_ref[dj]))
    colmax_bf = colmax.astype(jnp.bfloat16)                # values exactly bf16
    ppad = _dot(rowsel_ref[0], colmax_bf)                  # (HP, GWPP) = (14, 128)
    for di in range(1, KPOOL):
        ppad = jnp.maximum(ppad, _dot(rowsel_ref[di], colmax_bf))

    # ---- Conv2d(k=6, s=1, p=3) as ONE im2row matmul (was 6 accumulating dots)
    ppad_ref[...] = ppad
    for kh in range(KH):                                   # aligned 128-lane stripes
        im2row_ref[:, pl.ds(kh * GWPP, GWPP)] = ppad_ref[pl.ds(kh, HO), :]
    conv = _dot(im2row_ref[...].astype(jnp.bfloat16), wtoep_ref[...])  # (9, 144)

    res = (conv + bias_ref[...]) * gamma_b                 # conv bias, gamma scale
    out_ref[...] = jnp.maximum(res, 0.0)                   # ReLU


# ------------------------------------------------------------------
# Constant / parameter re-packing (pure parameter setup, done once in numpy)
# ------------------------------------------------------------------
def build_constants(fc1_w, fc2_w, conv_w, conv_b):
    fc1 = np.asarray(fc1_w, np.float32)      # (C*OUTP, DEV)
    fc2 = np.asarray(fc2_w, np.float32)      # (OUTP*OUTP, DEV)
    wc = np.asarray(conv_w, np.float32)      # (OUTP, C, KH, KW)
    bc = np.asarray(conv_b, np.float32)      # (OUTP,)

    # avg-pool group-sum * 1/(H*W), fused with the duplication-over-OUTP (e1):
    #   avg_rep[(b*C+c)*OUTP + o] = mean_{h,w} x[b, c, h, w]
    gsum_e1 = np.zeros((GW, CO), np.float32)
    for g in range(G):
        gsum_e1[g * W:(g + 1) * W, g * OUTP:(g + 1) * OUTP] = 1.0 / float(H * W)

    # device_fc1 / device_fc2 transposed, block-diagonal over batch, concatenated
    # along N with the fc2 block at a 128-aligned lane offset.
    w12t = np.zeros((BN * DEV, P12), np.float32)
    for b in range(BN):
        w12t[b * DEV:(b + 1) * DEV, b * C * OUTP:(b + 1) * C * OUTP] = fc1.T
        w12t[b * DEV:(b + 1) * DEV,
             P2OFF + b * OUTP * OUTP:P2OFF + (b + 1) * OUTP * OUTP] = fc2.T

    # summing matrices with the downstream duplication matrices folded in
    # (LeakyReLU / sigmoid commute with column duplication -> exact).
    g1 = np.zeros((CO, NO), np.float32)
    e2 = np.zeros((NO, OO), np.float32)
    g2 = np.zeros((OO, NO), np.float32)
    for b in range(BN):
        for c in range(C):
            for o in range(OUTP):
                g1[(b * C + c) * OUTP + o, b * OUTP + o] = 1.0
        for i in range(OUTP):
            for o in range(OUTP):
                e2[b * OUTP + i, b * OUTP * OUTP + i * OUTP + o] = 1.0
                g2[b * OUTP * OUTP + i * OUTP + o, b * OUTP + o] = 1.0
    eg = np.repeat(np.eye(NO, dtype=np.float32), WO, axis=1)      # (16, 144)
    g1e2 = g1 @ e2                                                # (64, 128)
    g2eg = g2 @ eg                                                # (128, 144)

    # stride-2, edge-clamped (== ceil_mode partial window) pool selectors that
    # place the pooled tile at offset PAD inside a 16-lane per-group slot.
    rowsel = np.zeros((KPOOL, HP, H), np.float32)
    for di in range(KPOOL):
        for i in range(HM):
            rowsel[di, i + PAD, min(SPOOL * i + di, H - 1)] = 1.0
    colsel_bd = np.zeros((KPOOL, GW, GWPP), np.float32)
    for dj in range(KPOOL):
        for g in range(G):
            for j in range(WM):
                colsel_bd[dj, g * W + min(SPOOL * j + dj, W - 1),
                          g * WPP + j + PAD] = 1.0

    # conv1 weights as ONE im2row Toeplitz matrix, block-diagonal over batch:
    #   wtoep[kh*GWPP + (b*C+c)*WPP + (j+kw), (b*OUTP+o)*WO + j] = wc[o,c,kh,kw]
    wtoep = np.zeros((KIM, OUT_LANES), np.float32)
    for kh in range(KH):
        for b in range(BN):
            for c in range(C):
                for o in range(OUTP):
                    for kw in range(KW):
                        for j in range(WO):
                            wtoep[kh * GWPP + (b * C + c) * WPP + j + kw,
                                  (b * OUTP + o) * WO + j] = wc[o, c, kh, kw]

    bias_b = np.tile(np.repeat(bc, WO), BN)[None, :]              # (1, OUT_LANES)

    bf16 = lambda a: jnp.asarray(a, jnp.bfloat16)
    return (bf16(gsum_e1), bf16(w12t), bf16(g1e2), bf16(g2eg), bf16(rowsel),
            bf16(colsel_bd), bf16(wtoep), jnp.asarray(bias_b, jnp.float32))


# ------------------------------------------------------------------
# Wrapper
# ------------------------------------------------------------------
def device_channel_attention_forward(x, device_id, consts):
    (gsum_e1, w12t, g1e2, g2eg, rowsel, colsel_bd, wtoep, bias_b) = consts
    bn = x.shape[0]
    assert bn == BN, "constants are packed for BN batch elements"

    # layout plumbing (outside the kernel): lanes = (b, c, w); rows = h
    x_fused = x.transpose(2, 0, 1, 3).reshape(H, bn * C * W)      # (16, 128) f32
    dev_flat = device_id.reshape(1, bn * DEV)                     # (1, 24)   f32

    grid_spec = pltpu.PrefetchScalarGridSpec(
        num_scalar_prefetch=0,
        grid=(1,),
        in_specs=[
            pl.BlockSpec((H, GW), lambda i: (0, 0)),                   # x
            pl.BlockSpec((1, BN * DEV), lambda i: (0, 0)),             # device_id
            pl.BlockSpec((GW, CO), lambda i: (0, 0)),                  # gsum_e1
            pl.BlockSpec((BN * DEV, P12), lambda i: (0, 0)),           # w12t
            pl.BlockSpec((CO, OO), lambda i: (0, 0)),                  # g1e2
            pl.BlockSpec((OO, OUT_LANES), lambda i: (0, 0)),           # g2eg
            pl.BlockSpec((KPOOL, HP, H), lambda i: (0, 0, 0)),         # rowsel
            pl.BlockSpec((KPOOL, GW, GWPP), lambda i: (0, 0, 0)),      # colsel
            pl.BlockSpec((KIM, OUT_LANES), lambda i: (0, 0)),          # wtoep
            pl.BlockSpec((1, OUT_LANES), lambda i: (0, 0)),            # bias
        ],
        out_specs=pl.BlockSpec((HO, OUT_LANES), lambda i: (0, 0)),
        scratch_shapes=[pltpu.VMEM((HP, GWPP), jnp.float32),           # ppad
                        pltpu.VMEM((HO, KIM), jnp.float32)],           # im2row
    )

    y_flat = pl.pallas_call(
        dca_kernel,
        grid_spec=grid_spec,
        out_shape=jax.ShapeDtypeStruct((HO, OUT_LANES), jnp.float32),
        compiler_params=pltpu.CompilerParams(
            dimension_semantics=("arbitrary",)),
    )(x_fused, dev_flat, gsum_e1, w12t, g1e2, g2eg, rowsel, colsel_bd,
      wtoep, bias_b)

    # glue: lane = (b*OUTP + o)*WO + j  ->  NCHW (bn, OUTP, HO, WO)
    return y_flat.reshape(HO, bn, OUTP, WO).transpose(1, 2, 0, 3)


# ------------------------------------------------------------------
# Pure-JAX reference (for correctness check only)
# ------------------------------------------------------------------
def reference_forward(x, device_id, fc1_w, fc2_w, conv_w, conv_b):
    bn = x.shape[0]
    avg = jnp.mean(x, axis=(2, 3))                                    # (bn, C)
    p1 = jnp.dot(device_id, fc1_w.T, precision=HIGH).reshape(bn, C, OUTP)
    feat = jnp.einsum('bc,bco->bo', avg, p1, precision=HIGH)
    feat = jnp.where(feat >= 0.0, feat, 0.1 * feat)
    p2 = jnp.dot(device_id, fc2_w.T, precision=HIGH).reshape(bn, OUTP, OUTP)
    feat = jnp.einsum('bi,bij->bj', feat, p2, precision=HIGH)
    gamma = jax.nn.sigmoid(feat)[:, :, None, None]                    # (bn, OUTP, 1, 1)

    xp = jnp.pad(x, ((0, 0), (0, 0), (0, 1), (0, 1)), mode='edge')    # ceil_mode pad
    pooled = None
    for di in range(KPOOL):
        for dj in range(KPOOL):
            cand = xp[:, :, di:di + SPOOL * HM:SPOOL, dj:dj + SPOOL * WM:SPOOL]
            pooled = cand if pooled is None else jnp.maximum(pooled, cand)

    conv = jax.lax.conv_general_dilated(
        pooled, conv_w, window_strides=(1, 1),
        padding=((PAD, PAD), (PAD, PAD)),
        dimension_numbers=('NCHW', 'OIHW', 'NCHW'), precision=HIGH)
    conv = conv + conv_b.reshape(1, OUTP, 1, 1)
    return jax.nn.relu(conv * gamma)


# ------------------------------------------------------------------
if __name__ == "__main__":
    key = jax.random.PRNGKey(0)
    kx, kd, kw1, kw2, kwc, kbc = jax.random.split(key, 6)

    x = jax.random.normal(kx, (BN, C, H, W), jnp.float32)
    device_id = jax.random.uniform(kd, (BN, DEV), jnp.float32)

    bound_fc = 1.0 / np.sqrt(DEV)
    fc1_w = jax.random.uniform(kw1, (C * OUTP, DEV), jnp.float32, -bound_fc, bound_fc)
    fc2_w = jax.random.uniform(kw2, (OUTP * OUTP, DEV), jnp.float32, -bound_fc, bound_fc)
    bound_c = 1.0 / np.sqrt(C * KH * KW)
    conv_w = jax.random.uniform(kwc, (OUTP, C, KH, KW), jnp.float32, -bound_c, bound_c)
    conv_b = jax.random.uniform(kbc, (OUTP,), jnp.float32, -bound_c, bound_c)

    consts = build_constants(fc1_w, fc2_w, conv_w, conv_b)

    y = device_channel_attention_forward(x, device_id, consts)
    y = jax.block_until_ready(y)
    assert y.shape == (BN, OUTP, HO, WO), y.shape

    y_ref = jax.block_until_ready(
        reference_forward(x, device_id, fc1_w, fc2_w, conv_w, conv_b))
    np.testing.assert_allclose(np.asarray(y), np.asarray(y_ref),
                               rtol=2e-2, atol=2e-2)
    print("KERNEL_OK")
</pallas_src>

<mosaic_0001>
module attributes {stable_mosaic.version = 11 : i64} {
  func.func @dca_kernel(%arg0: i32, %arg1: memref<16x128xf32, #tpu.memory_space<vmem>>, %arg2: memref<1x24xf32, #tpu.memory_space<vmem>>, %arg3: memref<128x64xbf16, #tpu.memory_space<vmem>>, %arg4: memref<24x256xbf16, #tpu.memory_space<vmem>>, %arg5: memref<64x128xbf16, #tpu.memory_space<vmem>>, %arg6: memref<128x144xbf16, #tpu.memory_space<vmem>>, %arg7: memref<3x14x16xbf16, #tpu.memory_space<vmem>>, %arg8: memref<3x128x128xbf16, #tpu.memory_space<vmem>>, %arg9: memref<768x144xbf16, #tpu.memory_space<vmem>>, %arg10: memref<1x144xf32, #tpu.memory_space<vmem>>, %arg11: memref<9x144xf32, #tpu.memory_space<vmem>>, %arg12: memref<14x128xf32, #tpu.memory_space<vmem>>, %arg13: memref<9x768xf32, #tpu.memory_space<vmem>>) attributes {dimension_semantics = [#tpu.dimension_semantics<arbitrary>], iteration_bounds = array<i64: 1>, scalar_prefetch = 0 : i64, scratch_operands = 2 : i64, tpu.core_type = #tpu.core_type<tc>, window_params = [{pipeline_mode = #tpu.pipeline_mode<synchronous>, transform_indices = @transform_0, window_bounds = array<i64: 16, 128>}, {pipeline_mode = #tpu.pipeline_mode<synchronous>, transform_indices = @transform_1, window_bounds = array<i64: 1, 24>}, {pipeline_mode = #tpu.pipeline_mode<synchronous>, transform_indices = @transform_2, window_bounds = array<i64: 128, 64>}, {pipeline_mode = #tpu.pipeline_mode<synchronous>, transform_indices = @transform_3, window_bounds = array<i64: 24, 256>}, {pipeline_mode = #tpu.pipeline_mode<synchronous>, transform_indices = @transform_4, window_bounds = array<i64: 64, 128>}, {pipeline_mode = #tpu.pipeline_mode<synchronous>, transform_indices = @transform_5, window_bounds = array<i64: 128, 144>}, {pipeline_mode = #tpu.pipeline_mode<synchronous>, transform_indices = @transform_6, window_bounds = array<i64: 3, 14, 16>}, {pipeline_mode = #tpu.pipeline_mode<synchronous>, transform_indices = @transform_7, window_bounds = array<i64: 3, 128, 128>}, {pipeline_mode = #tpu.pipeline_mode<synchronous>, transform_indices = @transform_8, window_bounds = array<i64: 768, 144>}, {pipeline_mode = #tpu.pipeline_mode<synchronous>, transform_indices = @transform_9, window_bounds = array<i64: 1, 144>}, {pipeline_mode = #tpu.pipeline_mode<synchronous>, transform_indices = @transform_10, window_bounds = array<i64: 9, 144>}]} {
    %c0 = arith.constant 0 : index
    %c0_0 = arith.constant 0 : index
    %0 = vector.load %arg1[%c0, %c0_0] : memref<16x128xf32, #tpu.memory_space<vmem>>, vector<16x128xf32>
    %1 = arith.truncf %0 : vector<16x128xf32> to vector<16x128xbf16>
    %cst = arith.constant dense<0.000000e+00> : vector<128xf32>
    %2 = vector.multi_reduction <add>, %0, %cst [0] : vector<16x128xf32> to vector<128xf32>
    %3 = vector.shape_cast %2 : vector<128xf32> to vector<1x128xf32>
    %4 = arith.truncf %3 : vector<1x128xf32> to vector<1x128xbf16>
    %c0_1 = arith.constant 0 : index
    %c0_2 = arith.constant 0 : index
    %5 = vector.load %arg3[%c0_1, %c0_2] : memref<128x64xbf16, #tpu.memory_space<vmem>>, vector<128x64xbf16>
    %cst_3 = arith.constant dense<0.000000e+00> : vector<1x64xf32>
    %6 = tpu.matmul %4, %5, %cst_3 {dimension_numbers = #tpu.dot_dimension_numbers<[1], [0], [0], [1], [0, 0, 1, 1], [], []>} : vector<1x128xbf16>, vector<128x64xbf16>, vector<1x64xf32> -> vector<1x64xf32>
    %c0_4 = arith.constant 0 : index
    %c0_5 = arith.constant 0 : index
    %7 = vector.load %arg2[%c0_4, %c0_5] : memref<1x24xf32, #tpu.memory_space<vmem>>, vector<1x24xf32>
    %8 = arith.truncf %7 : vector<1x24xf32> to vector<1x24xbf16>
    %c0_6 = arith.constant 0 : index
    %c0_7 = arith.constant 0 : index
    %9 = vector.load %arg4[%c0_6, %c0_7] : memref<24x256xbf16, #tpu.memory_space<vmem>>, vector<24x256xbf16>
    %cst_8 = arith.constant dense<0.000000e+00> : vector<1x256xf32>
    %10 = tpu.matmul %8, %9, %cst_8 {dimension_numbers = #tpu.dot_dimension_numbers<[1], [0], [0], [1], [0, 0, 1, 1], [], []>} : vector<1x24xbf16>, vector<24x256xbf16>, vector<1x256xf32> -> vector<1x256xf32>
    %11 = vector.extract_strided_slice %10 {offsets = [0, 0], sizes = [1, 64], strides = [1, 1]} : vector<1x256xf32> to vector<1x64xf32>
    %12 = vector.extract_strided_slice %10 {offsets = [0, 128], sizes = [1, 128], strides = [1, 1]} : vector<1x256xf32> to vector<1x128xf32>
    %13 = arith.mulf %6, %11 : vector<1x64xf32>
    %14 = arith.truncf %13 : vector<1x64xf32> to vector<1x64xbf16>
    %c0_9 = arith.constant 0 : index
    %c0_10 = arith.constant 0 : index
    %15 = vector.load %arg5[%c0_9, %c0_10] : memref<64x128xbf16, #tpu.memory_space<vmem>>, vector<64x128xbf16>
    %cst_11 = arith.constant dense<0.000000e+00> : vector<1x128xf32>
    %16 = tpu.matmul %14, %15, %cst_11 {dimension_numbers = #tpu.dot_dimension_numbers<[1], [0], [0], [1], [0, 0, 1, 1], [], []>} : vector<1x64xbf16>, vector<64x128xbf16>, vector<1x128xf32> -> vector<1x128xf32>
    %cst_12 = arith.constant 0.000000e+00 : f32
    %17 = vector.broadcast %cst_12 : f32 to vector<1x128xf32>
    %18 = arith.cmpf oge, %16, %17 : vector<1x128xf32>
    %cst_13 = arith.constant 1.000000e-01 : f32
    %19 = vector.broadcast %cst_13 : f32 to vector<1x128xf32>
    %20 = arith.mulf %19, %16 : vector<1x128xf32>
    %21 = arith.select %18, %16, %20 : vector<1x128xi1>, vector<1x128xf32>
    %22 = arith.mulf %21, %12 : vector<1x128xf32>
    %23 = arith.truncf %22 : vector<1x128xf32> to vector<1x128xbf16>
    %c0_14 = arith.constant 0 : index
    %c0_15 = arith.constant 0 : index
    %24 = vector.load %arg6[%c0_14, %c0_15] : memref<128x144xbf16, #tpu.memory_space<vmem>>, vector<128x144xbf16>
    %cst_16 = arith.constant dense<0.000000e+00> : vector<1x144xf32>
    %25 = tpu.matmul %23, %24, %cst_16 {dimension_numbers = #tpu.dot_dimension_numbers<[1], [0], [0], [1], [0, 0, 1, 1], [], []>} : vector<1x128xbf16>, vector<128x144xbf16>, vector<1x144xf32> -> vector<1x144xf32>
    %cst_17 = arith.constant 0.000000e+00 : f32
    %26 = vector.broadcast %cst_17 : f32 to vector<1x144xf32>
    %27 = arith.subf %26, %25 : vector<1x144xf32>
    %28 = math.exp %27 : vector<1x144xf32>
    %cst_18 = arith.constant 1.000000e+00 : f32
    %29 = vector.broadcast %cst_18 : f32 to vector<1x144xf32>
    %30 = arith.addf %29, %28 : vector<1x144xf32>
    %31 = tpu.reciprocal %30 {approx = true} : vector<1x144xf32> -> vector<1x144xf32>
    %c0_19 = arith.constant 0 : index
    %c0_20 = arith.constant 0 : index
    %c0_21 = arith.constant 0 : index
    %32 = vector.load %arg8[%c0_19, %c0_20, %c0_21] : memref<3x128x128xbf16, #tpu.memory_space<vmem>>, vector<1x128x128xbf16>
    %33 = vector.shape_cast %32 : vector<1x128x128xbf16> to vector<128x128xbf16>
    %cst_22 = arith.constant dense<0.000000e+00> : vector<16x128xf32>
    %34 = tpu.matmul %1, %33, %cst_22 {dimension_numbers = #tpu.dot_dimension_numbers<[1], [0], [0], [1], [0, 0, 1, 1], [], []>} : vector<16x128xbf16>, vector<128x128xbf16>, vector<16x128xf32> -> vector<16x128xf32>
    %c1 = arith.constant 1 : index
    %c0_23 = arith.constant 0 : index
    %c0_24 = arith.constant 0 : index
    %35 = vector.load %arg8[%c1, %c0_23, %c0_24] : memref<3x128x128xbf16, #tpu.memory_space<vmem>>, vector<1x128x128xbf16>
    %36 = vector.shape_cast %35 : vector<1x128x128xbf16> to vector<128x128xbf16>
    %cst_25 = arith.constant dense<0.000000e+00> : vector<16x128xf32>
    %37 = tpu.matmul %1, %36, %cst_25 {dimension_numbers = #tpu.dot_dimension_numbers<[1], [0], [0], [1], [0, 0, 1, 1], [], []>} : vector<16x128xbf16>, vector<128x128xbf16>, vector<16x128xf32> -> vector<16x128xf32>
    %38 = arith.maximumf %34, %37 : vector<16x128xf32>
    %c2 = arith.constant 2 : index
    %c0_26 = arith.constant 0 : index
    %c0_27 = arith.constant 0 : index
    %39 = vector.load %arg8[%c2, %c0_26, %c0_27] : memref<3x128x128xbf16, #tpu.memory_space<vmem>>, vector<1x128x128xbf16>
    %40 = vector.shape_cast %39 : vector<1x128x128xbf16> to vector<128x128xbf16>
    %cst_28 = arith.constant dense<0.000000e+00> : vector<16x128xf32>
    %41 = tpu.matmul %1, %40, %cst_28 {dimension_numbers = #tpu.dot_dimension_numbers<[1], [0], [0], [1], [0, 0, 1, 1], [], []>} : vector<16x128xbf16>, vector<128x128xbf16>, vector<16x128xf32> -> vector<16x128xf32>
    %42 = arith.maximumf %38, %41 : vector<16x128xf32>
    %43 = arith.truncf %42 : vector<16x128xf32> to vector<16x128xbf16>
    %c0_29 = arith.constant 0 : index
    %c0_30 = arith.constant 0 : index
    %c0_31 = arith.constant 0 : index
    %44 = vector.load %arg7[%c0_29, %c0_30, %c0_31] : memref<3x14x16xbf16, #tpu.memory_space<vmem>>, vector<1x14x16xbf16>
    %45 = vector.shape_cast %44 : vector<1x14x16xbf16> to vector<14x16xbf16>
    %cst_32 = arith.constant dense<0.000000e+00> : vector<14x128xf32>
    %46 = tpu.matmul %45, %43, %cst_32 {dimension_numbers = #tpu.dot_dimension_numbers<[1], [0], [0], [1], [0, 0, 1, 1], [], []>} : vector<14x16xbf16>, vector<16x128xbf16>, vector<14x128xf32> -> vector<14x128xf32>
    %c1_33 = arith.constant 1 : index
    %c0_34 = arith.constant 0 : index
    %c0_35 = arith.constant 0 : index
    %47 = vector.load %arg7[%c1_33, %c0_34, %c0_35] : memref<3x14x16xbf16, #tpu.memory_space<vmem>>, vector<1x14x16xbf16>
    %48 = vector.shape_cast %47 : vector<1x14x16xbf16> to vector<14x16xbf16>
    %cst_36 = arith.constant dense<0.000000e+00> : vector<14x128xf32>
    %49 = tpu.matmul %48, %43, %cst_36 {dimension_numbers = #tpu.dot_dimension_numbers<[1], [0], [0], [1], [0, 0, 1, 1], [], []>} : vector<14x16xbf16>, vector<16x128xbf16>, vector<14x128xf32> -> vector<14x128xf32>
    %50 = arith.maximumf %46, %49 : vector<14x128xf32>
    %c2_37 = arith.constant 2 : index
    %c0_38 = arith.constant 0 : index
    %c0_39 = arith.constant 0 : index
    %51 = vector.load %arg7[%c2_37, %c0_38, %c0_39] : memref<3x14x16xbf16, #tpu.memory_space<vmem>>, vector<1x14x16xbf16>
    %52 = vector.shape_cast %51 : vector<1x14x16xbf16> to vector<14x16xbf16>
    %cst_40 = arith.constant dense<0.000000e+00> : vector<14x128xf32>
    %53 = tpu.matmul %52, %43, %cst_40 {dimension_numbers = #tpu.dot_dimension_numbers<[1], [0], [0], [1], [0, 0, 1, 1], [], []>} : vector<14x16xbf16>, vector<16x128xbf16>, vector<14x128xf32> -> vector<14x128xf32>
    %54 = arith.maximumf %50, %53 : vector<14x128xf32>
    %c0_41 = arith.constant 0 : index
    %c0_42 = arith.constant 0 : index
    %55 = vector.load %arg12[%c0_41, %c0_42] : memref<14x128xf32, #tpu.memory_space<vmem>>, vector<14x128xf32>
    tpu.vector_store %arg12[%c0_41, %c0_42], %54 {strides = array<i32>} : memref<14x128xf32, #tpu.memory_space<vmem>>, vector<14x128xf32>,
    %c0_43 = arith.constant 0 : index
    %c0_44 = arith.constant 0 : index
    %56 = vector.load %arg12[%c0_43, %c0_44] : memref<14x128xf32, #tpu.memory_space<vmem>>, vector<9x128xf32>
    %c0_45 = arith.constant 0 : index
    %c0_46 = arith.constant 0 : index
    %57 = vector.load %arg13[%c0_45, %c0_46] : memref<9x768xf32, #tpu.memory_space<vmem>>, vector<9x128xf32>
    tpu.vector_store %arg13[%c0_45, %c0_46], %56 {strides = array<i32>} : memref<9x768xf32, #tpu.memory_space<vmem>>, vector<9x128xf32>,
    %c1_47 = arith.constant 1 : index
    %c0_48 = arith.constant 0 : index
    %58 = vector.load %arg12[%c1_47, %c0_48] : memref<14x128xf32, #tpu.memory_space<vmem>>, vector<9x128xf32>
    %c0_49 = arith.constant 0 : index
    %c128 = arith.constant 128 : index
    %59 = vector.load %arg13[%c0_49, %c128] : memref<9x768xf32, #tpu.memory_space<vmem>>, vector<9x128xf32>
    tpu.vector_store %arg13[%c0_49, %c128], %58 {strides = array<i32>} : memref<9x768xf32, #tpu.memory_space<vmem>>, vector<9x128xf32>,
    %c2_50 = arith.constant 2 : index
    %c0_51 = arith.constant 0 : index
    %60 = vector.load %arg12[%c2_50, %c0_51] : memref<14x128xf32, #tpu.memory_space<vmem>>, vector<9x128xf32>
    %c0_52 = arith.constant 0 : index
    %c256 = arith.constant 256 : index
    %61 = vector.load %arg13[%c0_52, %c256] : memref<9x768xf32, #tpu.memory_space<vmem>>, vector<9x128xf32>
    tpu.vector_store %arg13[%c0_52, %c256], %60 {strides = array<i32>} : memref<9x768xf32, #tpu.memory_space<vmem>>, vector<9x128xf32>,
    %c3 = arith.constant 3 : index
    %c0_53 = arith.constant 0 : index
    %62 = vector.load %arg12[%c3, %c0_53] : memref<14x128xf32, #tpu.memory_space<vmem>>, vector<9x128xf32>
    %c0_54 = arith.constant 0 : index
    %c384 = arith.constant 384 : index
    %63 = vector.load %arg13[%c0_54, %c384] : memref<9x768xf32, #tpu.memory_space<vmem>>, vector<9x128xf32>
    tpu.vector_store %arg13[%c0_54, %c384], %62 {strides = array<i32>} : memref<9x768xf32, #tpu.memory_space<vmem>>, vector<9x128xf32>,
    %c4 = arith.constant 4 : index
    %c0_55 = arith.constant 0 : index
    %64 = vector.load %arg12[%c4, %c0_55] : memref<14x128xf32, #tpu.memory_space<vmem>>, vector<9x128xf32>
    %c0_56 = arith.constant 0 : index
    %c512 = arith.constant 512 : index
    %65 = vector.load %arg13[%c0_56, %c512] : memref<9x768xf32, #tpu.memory_space<vmem>>, vector<9x128xf32>
    tpu.vector_store %arg13[%c0_56, %c512], %64 {strides = array<i32>} : memref<9x768xf32, #tpu.memory_space<vmem>>, vector<9x128xf32>,
    %c5 = arith.constant 5 : index
    %c0_57 = arith.constant 0 : index
    %66 = vector.load %arg12[%c5, %c0_57] : memref<14x128xf32, #tpu.memory_space<vmem>>, vector<9x128xf32>
    %c0_58 = arith.constant 0 : index
    %c640 = arith.constant 640 : index
    %67 = vector.load %arg13[%c0_58, %c640] : memref<9x768xf32, #tpu.memory_space<vmem>>, vector<9x128xf32>
    tpu.vector_store %arg13[%c0_58, %c640], %66 {strides = array<i32>} : memref<9x768xf32, #tpu.memory_space<vmem>>, vector<9x128xf32>,
    %c0_59 = arith.constant 0 : index
    %c0_60 = arith.constant 0 : index
    %68 = vector.load %arg13[%c0_59, %c0_60] : memref<9x768xf32, #tpu.memory_space<vmem>>, vector<9x768xf32>
    %69 = arith.truncf %68 : vector<9x768xf32> to vector<9x768xbf16>
    %c0_61 = arith.constant 0 : index
    %c0_62 = arith.constant 0 : index
    %70 = vector.load %arg9[%c0_61, %c0_62] : memref<768x144xbf16, #tpu.memory_space<vmem>>, vector<768x144xbf16>
    %cst_63 = arith.constant dense<0.000000e+00> : vector<9x144xf32>
    %71 = tpu.matmul %69, %70, %cst_63 {dimension_numbers = #tpu.dot_dimension_numbers<[1], [0], [0], [1], [0, 0, 1, 1], [], []>} : vector<9x768xbf16>, vector<768x144xbf16>, vector<9x144xf32> -> vector<9x144xf32>
    %c0_64 = arith.constant 0 : index
    %c0_65 = arith.constant 0 : index
    %72 = vector.load %arg10[%c0_64, %c0_65] : memref<1x144xf32, #tpu.memory_space<vmem>>, vector<1x144xf32>
    %73 = vector.broadcast %72 : vector<1x144xf32> to vector<9x144xf32>
    %74 = arith.addf %71, %73 : vector<9x144xf32>
    %75 = vector.broadcast %31 : vector<1x144xf32> to vector<9x144xf32>
    %76 = arith.mulf %74, %75 : vector<9x144xf32>
    %cst_66 = arith.constant 0.000000e+00 : f32
    %77 = vector.broadcast %cst_66 : f32 to vector<9x144xf32>
    %78 = arith.maximumf %76, %77 : vector<9x144xf32>
    %c0_67 = arith.constant 0 : index
    %c0_68 = arith.constant 0 : index
    %79 = vector.load %arg11[%c0_67, %c0_68] : memref<9x144xf32, #tpu.memory_space<vmem>>, vector<9x144xf32>
    tpu.vector_store %arg11[%c0_67, %c0_68], %78 {strides = array<i32>} : memref<9x144xf32, #tpu.memory_space<vmem>>, vector<9x144xf32>,
    return
  }
  func.func @transform_0(%arg0: i32) -> (i32, i32) {
    %c0_i32 = arith.constant 0 : i32
    %c0_i32_0 = arith.constant 0 : i32
    %c0_i32_1 = arith.constant 0 : i32
    return %c0_i32, %c0_i32_0 : i32, i32
  }
  func.func @transform_1(%arg0: i32) -> (i32, i32) {
    %c0_i32 = arith.constant 0 : i32
    %c0_i32_0 = arith.constant 0 : i32
    %c0_i32_1 = arith.constant 0 : i32
    return %c0_i32, %c0_i32_0 : i32, i32
  }
  func.func @transform_2(%arg0: i32) -> (i32, i32) {
    %c0_i32 = arith.constant 0 : i32
    %c0_i32_0 = arith.constant 0 : i32
    %c0_i32_1 = arith.constant 0 : i32
    return %c0_i32, %c0_i32_0 : i32, i32
  }
  func.func @transform_3(%arg0: i32) -> (i32, i32) {
    %c0_i32 = arith.constant 0 : i32
    %c0_i32_0 = arith.constant 0 : i32
    %c0_i32_1 = arith.constant 0 : i32
    return %c0_i32, %c0_i32_0 : i32, i32
  }
  func.func @transform_4(%arg0: i32) -> (i32, i32) {
    %c0_i32 = arith.constant 0 : i32
    %c0_i32_0 = arith.constant 0 : i32
    %c0_i32_1 = arith.constant 0 : i32
    return %c0_i32, %c0_i32_0 : i32, i32
  }
  func.func @transform_5(%arg0: i32) -> (i32, i32) {
    %c0_i32 = arith.constant 0 : i32
    %c0_i32_0 = arith.constant 0 : i32
    %c0_i32_1 = arith.constant 0 : i32
    return %c0_i32, %c0_i32_0 : i32, i32
  }
  func.func @transform_6(%arg0: i32) -> (i32, i32, i32) {
    %c0_i32 = arith.constant 0 : i32
    %c0_i32_0 = arith.constant 0 : i32
    %c0_i32_1 = arith.constant 0 : i32
    %c0_i32_2 = arith.constant 0 : i32
    return %c0_i32, %c0_i32_0, %c0_i32_1 : i32, i32, i32
  }
  func.func @transform_7(%arg0: i32) -> (i32, i32, i32) {
    %c0_i32 = arith.constant 0 : i32
    %c0_i32_0 = arith.constant 0 : i32
    %c0_i32_1 = arith.constant 0 : i32
    %c0_i32_2 = arith.constant 0 : i32
    return %c0_i32, %c0_i32_0, %c0_i32_1 : i32, i32, i32
  }
  func.func @transform_8(%arg0: i32) -> (i32, i32) {
    %c0_i32 = arith.constant 0 : i32
    %c0_i32_0 = arith.constant 0 : i32
    %c0_i32_1 = arith.constant 0 : i32
    return %c0_i32, %c0_i32_0 : i32, i32
  }
  func.func @transform_9(%arg0: i32) -> (i32, i32) {
    %c0_i32 = arith.constant 0 : i32
    %c0_i32_0 = arith.constant 0 : i32
    %c0_i32_1 = arith.constant 0 : i32
    return %c0_i32, %c0_i32_0 : i32, i32
  }
  func.func @transform_10(%arg0: i32) -> (i32, i32) {
    %c0_i32 = arith.constant 0 : i32
    %c0_i32_0 = arith.constant 0 : i32
    %c0_i32_1 = arith.constant 0 : i32
    return %c0_i32, %c0_i32_0 : i32, i32
  }
}

</mosaic_0001>

<llo_original>
// kernel: tpu_custom_call.1
$region0: #{tpu_custom_call.1}
  #allocation0 [shape = 'u32[]', space=smem, size = 0x4, offset = 0x4, fixed_abs, tag = 'smem constant byte address 0x4 - core index']
  #allocation1 [shape = 'u32[144,128]{1,0:T(1,128)}', space=vmem, size = 0x12000, scoped, tag = 'internal scratch']
  #allocation2 [shape = 'f32[14,128]{1,0:T(8,128)}', space=vmem, size = 0x2000, scoped, tag = 'scratch operand']
  #allocation3 [shape = 'f32[9,768]{1,0:T(8,128)}', space=vmem, size = 0xc000, scoped, tag = 'scratch operand']
  %s0 = inlined_call_operand.vmem [shape: f32[16,128], index: 0, kind: input, shape index: {}]
  %s1 = inlined_call_operand.vmem [shape: f32[1,24], index: 1, kind: input, shape index: {}]
  %s2 = inlined_call_operand.vmem [shape: bf16[128,64], index: 2, kind: input, shape index: {}]
  %s3 = inlined_call_operand.vmem [shape: bf16[24,256], index: 3, kind: input, shape index: {}]
  %s4 = inlined_call_operand.vmem [shape: bf16[64,128], index: 4, kind: input, shape index: {}]
  %s5 = inlined_call_operand.vmem [shape: bf16[128,144], index: 5, kind: input, shape index: {}]
  %s6 = inlined_call_operand.vmem [shape: bf16[3,14,16], index: 6, kind: input, shape index: {}]
  %s7 = inlined_call_operand.vmem [shape: bf16[3,128,128], index: 7, kind: input, shape index: {}]
  %s8 = inlined_call_operand.vmem [shape: bf16[768,144], index: 8, kind: input, shape index: {}]
  %s9 = inlined_call_operand.vmem [shape: f32[1,144], index: 9, kind: input, shape index: {}]
  %s10 = inlined_call_operand.hbm [shape: f32[9,144], index: 10, kind: output, shape index: {}]
  %s11 = sld [smem:[#allocation0]]
  $region50: #{tpu_custom_call.1} parent=0
    _
  %s13 = ssub.s32 1, %s11
  %s14 = scalar_select 0, %s13, %s11
  $region1: #{tpu_custom_call.1} parent=0
    #allocation4 [shape = 'u8[16384]{0}', space=vmem, size = 0x4000, scoped, tag = 'output window, operand 0, single buffered']
    #allocation5 [shape = 's32[1]{0}', space=sflag, size = 0x4, scoped, tag = 'scoped memory for tpu_custom_call.1']
    %15 = vsyncpa [#allocation5], 0
    // Predicated region
    $region2: #{tpu_custom_call.1} parent=1 // pred_check
      _
    $region3: #{tpu_custom_call.1} parent=1 // pred_check_branch
      %17 = sbr.rel (0) target = $region5
    $region4: #{tpu_custom_call.1} parent=1 // pred_region
      _
    $region5: #{tpu_custom_call.1} parent=1 // pred_fallthru
      _
    // Predicated region
    $region6: #{tpu_custom_call.1} parent=1 // pred_check
      _
    $region7: #{tpu_custom_call.1} parent=1 // pred_check_branch
      %19 = sbr.rel (0) target = $region9
    $region8: #{tpu_custom_call.1} parent=1 // pred_region
      _
    $region9: #{tpu_custom_call.1} parent=1 // pred_fallthru
      _
    // Predicated region
    $region10: #{tpu_custom_call.1} parent=1 // pred_check
      _
    $region11: #{tpu_custom_call.1} parent=1 // pred_check_branch
      %21 = sbr.rel (0) target = $region13
    $region12: #{tpu_custom_call.1} parent=1 // pred_region
      _
    $region13: #{tpu_custom_call.1} parent=1 // pred_fallthru
      _
    // Predicated region
    $region14: #{tpu_custom_call.1} parent=1 // pred_check
      _
    $region15: #{tpu_custom_call.1} parent=1 // pred_check_branch
      %23 = sbr.rel (0) target = $region17
    $region16: #{tpu_custom_call.1} parent=1 // pred_region
      _
    $region17: #{tpu_custom_call.1} parent=1 // pred_fallthru
      _
    // Predicated region
    $region18: #{tpu_custom_call.1} parent=1 // pred_check
      _
    $region19: #{tpu_custom_call.1} parent=1 // pred_check_branch
      %25 = sbr.rel (0) target = $region21
    $region20: #{tpu_custom_call.1} parent=1 // pred_region
      _
    $region21: #{tpu_custom_call.1} parent=1 // pred_fallthru
      _
    // Predicated region
    $region22: #{tpu_custom_call.1} parent=1 // pred_check
      _
    $region23: #{tpu_custom_call.1} parent=1 // pred_check_branch
      %27 = sbr.rel (0) target = $region25
    $region24: #{tpu_custom_call.1} parent=1 // pred_region
      _
    $region25: #{tpu_custom_call.1} parent=1 // pred_fallthru
      _
    // Predicated region
    $region26: #{tpu_custom_call.1} parent=1 // pred_check
      _
    $region27: #{tpu_custom_call.1} parent=1 // pred_check_branch
      %29 = sbr.rel (0) target = $region29
    $region28: #{tpu_custom_call.1} parent=1 // pred_region
      _
    $region29: #{tpu_custom_call.1} parent=1 // pred_fallthru
      _
    // Predicated region
    $region30: #{tpu_custom_call.1} parent=1 // pred_check
      _
    $region31: #{tpu_custom_call.1} parent=1 // pred_check_branch
      %31 = sbr.rel (0) target = $region33
    $region32: #{tpu_custom_call.1} parent=1 // pred_region
      _
    $region33: #{tpu_custom_call.1} parent=1 // pred_fallthru
      _
    // Predicated region
    $region34: #{tpu_custom_call.1} parent=1 // pred_check
      _
    $region35: #{tpu_custom_call.1} parent=1 // pred_check_branch
      %33 = sbr.rel (0) target = $region37
    $region36: #{tpu_custom_call.1} parent=1 // pred_region
      _
    $region37: #{tpu_custom_call.1} parent=1 // pred_fallthru
      _
    // Predicated region
    $region38: #{tpu_custom_call.1} parent=1 // pred_check
      _
    $region39: #{tpu_custom_call.1} parent=1 // pred_check_branch
      %35 = sbr.rel (0) target = $region41
    $region40: #{tpu_custom_call.1} parent=1 // pred_region
      _
    $region41: #{tpu_custom_call.1} parent=1 // pred_fallthru
      _
    %v37 = vld [vmem:[%s0] sm:$0xff]
    %v38 = vld [vmem:[%s0 + $0x8] sm:$0xff]
    %v39 = vpack.c.bf16 %v38, %v37
    %v40 = vadd.f32 %v37, %v38
    %v41 = vrot.slane %v40, 4
    %v42 = vadd.f32 %v40, %v41
    %v43 = vrot.slane %v42, 2
    %v44 = vadd.f32 %v42, %v43
    %v45 = vrot.slane %v44, 1
    %v46 = vadd.f32 %v44, %v45
    %v47 = vpack.c.bf16 %v46, %v46
    %v48 = vld [vmem:[%s2] sm:$0xf]
    %v49 = vld [vmem:[%s2 + $0x4] sm:$0xf]
    %v50 = vld [vmem:[%s2 + $0x8] sm:$0xf]
    %v51 = vld [vmem:[%s2 + $0xc] sm:$0xf]
    %v52 = vld [vmem:[%s2 + $0x10] sm:$0xf]
    %v53 = vld [vmem:[%s2 + $0x14] sm:$0xf]
    %v54 = vld [vmem:[%s2 + $0x18] sm:$0xf]
    %v55 = vld [vmem:[%s2 + $0x1c] sm:$0xf]
    %v56 = vld [vmem:[%s2 + $0x20] sm:$0xf]
    %v57 = vld [vmem:[%s2 + $0x24] sm:$0xf]
    %v58 = vld [vmem:[%s2 + $0x28] sm:$0xf]
    %v59 = vld [vmem:[%s2 + $0x2c] sm:$0xf]
    %v60 = vld [vmem:[%s2 + $0x30] sm:$0xf]
    %v61 = vld [vmem:[%s2 + $0x34] sm:$0xf]
    %v62 = vld [vmem:[%s2 + $0x38] sm:$0xf]
    %v63 = vld [vmem:[%s2 + $0x3c] sm:$0xf]
    %v80 = vunpack.c.l.b16 %v48
    %v81 = vunpack.c.l.b16 %v49
    %v82 = vunpack.c.l.b16 %v50
    %v83 = vunpack.c.l.b16 %v51
    %v84 = vunpack.c.l.b16 %v52
    %v85 = vunpack.c.l.b16 %v53
    %v86 = vunpack.c.l.b16 %v54
    %v87 = vunpack.c.l.b16 %v55
    %v88 = vunpack.c.l.b16 %v56
    %v89 = vunpack.c.l.b16 %v57
    %v90 = vunpack.c.l.b16 %v58
    %v91 = vunpack.c.l.b16 %v59
    %v92 = vunpack.c.l.b16 %v60
    %v93 = vunpack.c.l.b16 %v61
    %v94 = vunpack.c.l.b16 %v62
    %v95 = vunpack.c.l.b16 %v63
    %v96 = vpack.c.b16 %v81, %v80
    %v97 = vpack.c.b16 %v83, %v82
    %v98 = vpack.c.b16 %v85, %v84
    %v99 = vpack.c.b16 %v87, %v86
    %v100 = vpack.c.b16 %v89, %v88
    %v101 = vpack.c.b16 %v91, %v90
    %v102 = vpack.c.b16 %v93, %v92
    %v103 = vpack.c.b16 %v95, %v94
    %112 = vmatprep.subr.bf16.mxu0 0
    %113 = vmatpush1.bf16.msra.mxu0 %v103
    %114 = vmatprep.subr.bf16.mxu0 0
    %115 = vmatpush1.bf16.msra.mxu0 %v102
    %116 = vmatprep.subr.bf16.mxu0 0
    %117 = vmatpush1.bf16.msra.mxu0 %v101
    %118 = vmatprep.subr.bf16.mxu0 0
    %119 = vmatpush1.bf16.msra.mxu0 %v100
    %120 = vmatprep.subr.bf16.mxu0 0
    %121 = vmatpush1.bf16.msra.mxu0 %v99
    %122 = vmatprep.subr.bf16.mxu0 0
    %123 = vmatpush1.bf16.msra.mxu0 %v98
    %124 = vmatprep.subr.bf16.mxu0 0
    %125 = vmatpush1.bf16.msra.mxu0 %v97
    %126 = vmatprep.subr.bf16.mxu0 0
    %127 = vmatpush1.bf16.msra.mxu0 %v96
    %128 = vmatprep.subr.bf16.mxu0 0
    %129 = vmatpush2.bf16.msra.mxu0 0
    %130 = vmatprep.subr.bf16.mxu0 0
    %131 = vmatpush2.bf16.msra.mxu0 0
    %132 = vmatprep.subr.bf16.mxu0 0
    %133 = vmatpush2.bf16.msra.mxu0 0
    %134 = vmatprep.subr.bf16.mxu0 0
    %135 = vmatpush2.bf16.msra.mxu0 0
    %136 = vmatprep.subr.bf16.mxu0 0
    %137 = vmatpush2.bf16.msra.mxu0 0
    %138 = vmatprep.subr.bf16.mxu0 0
    %139 = vmatpush2.bf16.msra.mxu0 0
    %140 = vmatprep.subr.bf16.mxu0 0
    %141 = vmatpush2.bf16.msra.mxu0 0
    %142 = vmatprep.subr.bf16.mxu0 0
    %143 = vmatpush2.bf16.msra.mxu0 0
    %144 = vmatprep.mubr.bf16.mxu0 0
    %145 = vmatmul.mubr.bf16.gmra.mxu0 %v47
    %v146 = vpop.f32.mrf.mxu0
    %v147 = vadd.f32 0.0, %v146
    %v148 = vpop.f32.mrf.mxu0
    %v149 = vpop.f32.mrf.mxu0
    %v150 = vpop.f32.mrf.mxu0
    %151 = vdwg.mxu0
    %v152 = vld [vmem:[%s1] sm:$0x1]
    %v153 = vpack.c.bf16 %v152, %v152
    %v154 = vld [vmem:[%s3] sm:$0xff]
    %v155 = vld [vmem:[%s3 + $0x8] sm:$0xff]
    %v156 = vld [vmem:[%s3 + $0x10] sm:$0xff]
    %v160 = vunpack.c.l.b16 %v154
    %v161 = vunpack.c.h.b16 %v154
    %v162 = vunpack.c.l.b16 %v155
    %v163 = vunpack.c.h.b16 %v155
    %v164 = vunpack.c.l.b16 %v156
    %v165 = vunpack.c.h.b16 %v156
    %v166 = vpack.c.b16 %v162, %v160
    %v167 = vpack.c.b16 %v163, %v161
    %v168 = vpack.c.b16 %v164, %v164
    %v169 = vpack.c.b16 %v165, %v165
    %vm172 = vcmask 195584
    %v174 = vsel %vm172, %v153, 0
    %vm176 = vcmask 1043456
    %v178 = vsel %vm176, %v168, 0
    %v181 = vsel %vm176, %v169, 0
    %183 = vmatprep.subr.bf16.mxu0 0
    %184 = vmatpush1.bf16.msra.mxu0 0
    %185 = vmatprep.subr.bf16.mxu0 0
    %186 = vmatpush1.bf16.msra.mxu0 0
    %187 = vmatprep.subr.bf16.mxu0 0
    %188 = vmatpush1.bf16.msra.mxu0 0
    %189 = vmatprep.subr.bf16.mxu0 0
    %190 = vmatpush1.bf16.msra.mxu0 0
    %191 = vmatprep.subr.bf16.mxu0 0
    %192 = vmatpush1.bf16.msra.mxu0 0
    %193 = vmatprep.subr.bf16.mxu0 0
    %194 = vmatpush1.bf16.msra.mxu0 0
    %195 = vmatprep.subr.bf16.mxu0 %v181
    %196 = vmatpush1.bf16.msra.mxu0 %v178
    %197 = vmatprep.subr.bf16.mxu0 %v167
    %198 = vmatpush1.bf16.msra.mxu0 %v166
    %199 = vmatprep.subr.bf16.mxu0 0
    %200 = vmatpush2.bf16.msra.mxu0 0
    %201 = vmatprep.subr.bf16.mxu0 0
    %202 = vmatpush2.bf16.msra.mxu0 0
    %203 = vmatprep.subr.bf16.mxu0 0
    %204 = vmatpush2.bf16.msra.mxu0 0
    %205 = vmatprep.subr.bf16.mxu0 0
    %206 = vmatpush2.bf16.msra.mxu0 0
    %207 = vmatprep.subr.bf16.mxu0 0
    %208 = vmatpush2.bf16.msra.mxu0 0
    %209 = vmatprep.subr.bf16.mxu0 0
    %210 = vmatpush2.bf16.msra.mxu0 0
    %211 = vmatprep.subr.bf16.mxu0 0
    %212 = vmatpush2.bf16.msra.mxu0 0
    %213 = vmatprep.subr.bf16.mxu0 0
    %214 = vmatpush2.bf16.msra.mxu0 0
    %215 = vmatprep.mubr.bf16.mxu0 0
    %216 = vmatmul.mubr.bf16.gmra.mxu0 %v174
    %v217 = vpop.f32.mrf.mxu0
    %v218 = vadd.f32 0.0, %v217
    %v219 = vpop.f32.mrf.mxu0
    %v220 = vadd.f32 0.0, %v219
    %v221 = vpop.f32.mrf.mxu0
    %v222 = vpop.f32.mrf.mxu0
    %223 = vdwg.mxu0
    %v224 = vmul.f32 %v147, %v218
    %v225 = vpack.c.bf16 %v224, %v224
    %v226 = vld [vmem:[%s4] sm:$0xf]
    %v227 = vld [vmem:[%s4 + $0x4] sm:$0xf]
    %v228 = vld [vmem:[%s4 + $0x8] sm:$0xf]
    %v229 = vld [vmem:[%s4 + $0xc] sm:$0xf]
    %v230 = vld [vmem:[%s4 + $0x10] sm:$0xf]
    %v231 = vld [vmem:[%s4 + $0x14] sm:$0xf]
    %v232 = vld [vmem:[%s4 + $0x18] sm:$0xf]
    %v233 = vld [vmem:[%s4 + $0x1c] sm:$0xf]
    %v242 = vunpack.c.l.b16 %v226
    %v243 = vunpack.c.l.b16 %v227
    %v244 = vunpack.c.l.b16 %v228
    %v245 = vunpack.c.l.b16 %v229
    %v246 = vunpack.c.l.b16 %v230
    %v247 = vunpack.c.l.b16 %v231
    %v248 = vunpack.c.l.b16 %v232
    %v249 = vunpack.c.l.b16 %v233
    %v250 = vpack.c.b16 %v243, %v242
    %v251 = vpack.c.b16 %v245, %v244
    %v252 = vpack.c.b16 %v247, %v246
    %v253 = vpack.c.b16 %v249, %v248
    %vm258 = vcmask 523264
    %v260 = vsel %vm258, %v225, 0
    %262 = vmatprep.subr.bf16.mxu0 0
    %263 = vmatpush1.bf16.msra.mxu0 0
    %264 = vmatprep.subr.bf16.mxu0 0
    %265 = vmatpush1.bf16.msra.mxu0 0
    %266 = vmatprep.subr.bf16.mxu0 0
    %267 = vmatpush1.bf16.msra.mxu0 0
    %268 = vmatprep.subr.bf16.mxu0 0
    %269 = vmatpush1.bf16.msra.mxu0 0
    %270 = vmatprep.subr.bf16.mxu0 0
    %271 = vmatpush1.bf16.msra.mxu0 %v253
    %272 = vmatprep.subr.bf16.mxu0 0
    %273 = vmatpush1.bf16.msra.mxu0 %v252
    %274 = vmatprep.subr.bf16.mxu0 0
    %275 = vmatpush1.bf16.msra.mxu0 %v251
    %276 = vmatprep.subr.bf16.mxu0 0
    %277 = vmatpush1.bf16.msra.mxu0 %v250
    %278 = vmatprep.subr.bf16.mxu0 0
    %279 = vmatpush2.bf16.msra.mxu0 0
    %280 = vmatprep.subr.bf16.mxu0 0
    %281 = vmatpush2.bf16.msra.mxu0 0
    %282 = vmatprep.subr.bf16.mxu0 0
    %283 = vmatpush2.bf16.msra.mxu0 0
    %284 = vmatprep.subr.bf16.mxu0 0
    %285 = vmatpush2.bf16.msra.mxu0 0
    %286 = vmatprep.subr.bf16.mxu0 0
    %287 = vmatpush2.bf16.msra.mxu0 0
    %288 = vmatprep.subr.bf16.mxu0 0
    %289 = vmatpush2.bf16.msra.mxu0 0
    %290 = vmatprep.subr.bf16.mxu0 0
    %291 = vmatpush2.bf16.msra.mxu0 0
    %292 = vmatprep.subr.bf16.mxu0 0
    %293 = vmatpush2.bf16.msra.mxu0 0
    %294 = vmatprep.mubr.bf16.mxu0 0
    %295 = vmatmul.mubr.bf16.gmra.mxu0 %v260
    %v296 = vpop.f32.mrf.mxu0
    %v297 = vadd.f32 0.0, %v296
    %v298 = vpop.f32.mrf.mxu0
    %v299 = vpop.f32.mrf.mxu0
    %v300 = vpop.f32.mrf.mxu0
    %301 = vdwg.mxu0
    %vm302 = vcmp.ge.f32.partialorder %v297, 0.0
    %v303 = vmul.f32 %v297, 0.1
    %v304 = vsel %vm302, %v297, %v303
    %v305 = vmul.f32 %v304, %v220
    %v306 = vpack.c.bf16 %v305, %v305
    %v307 = vld [vmem:[%s5] sm:$0xff]
    %v308 = vld [vmem:[%s5 + $0x8] sm:$0xff]
    %v309 = vld [vmem:[%s5 + $0x10] sm:$0xff]
    %v310 = vld [vmem:[%s5 + $0x18] sm:$0xff]
    %v311 = vld [vmem:[%s5 + $0x20] sm:$0xff]
    %v312 = vld [vmem:[%s5 + $0x28] sm:$0xff]
    %v313 = vld [vmem:[%s5 + $0x30] sm:$0xff]
    %v314 = vld [vmem:[%s5 + $0x38] sm:$0xff]
    %v315 = vld [vmem:[%s5 + $0x40] sm:$0xff]
    %v316 = vld [vmem:[%s5 + $0x48] sm:$0xff]
    %v317 = vld [vmem:[%s5 + $0x50] sm:$0xff]
    %v318 = vld [vmem:[%s5 + $0x58] sm:$0xff]
    %v319 = vld [vmem:[%s5 + $0x60] sm:$0xff]
    %v320 = vld [vmem:[%s5 + $0x68] sm:$0xff]
    %v321 = vld [vmem:[%s5 + $0x70] sm:$0xff]
    %v322 = vld [vmem:[%s5 + $0x78] sm:$0xff]
    %v339 = vunpack.c.l.b16 %v307
    %v340 = vunpack.c.h.b16 %v307
    %v341 = vunpack.c.l.b16 %v308
    %v342 = vunpack.c.h.b16 %v308
    %v343 = vunpack.c.l.b16 %v309
    %v344 = vunpack.c.h.b16 %v309
    %v345 = vunpack.c.l.b16 %v310
    %v346 = vunpack.c.h.b16 %v310
    %v347 = vunpack.c.l.b16 %v311
    %v348 = vunpack.c.h.b16 %v311
    %v349 = vunpack.c.l.b16 %v312
    %v350 = vunpack.c.h.b16 %v312
    %v351 = vunpack.c.l.b16 %v313
    %v352 = vunpack.c.h.b16 %v313
    %v353 = vunpack.c.l.b16 %v314
    %v354 = vunpack.c.h.b16 %v314
    %v355 = vunpack.c.l.b16 %v315
    %v356 = vunpack.c.h.b16 %v315
    %v357 = vunpack.c.l.b16 %v316
    %v358 = vunpack.c.h.b16 %v316
    %v359 = vunpack.c.l.b16 %v317
    %v360 = vunpack.c.h.b16 %v317
    %v361 = vunpack.c.l.b16 %v318
    %v362 = vunpack.c.h.b16 %v318
    %v363 = vunpack.c.l.b16 %v319
    %v364 = vunpack.c.h.b16 %v319
    %v365 = vunpack.c.l.b16 %v320
    %v366 = vunpack.c.h.b16 %v320
    %v367 = vunpack.c.l.b16 %v321
    %v368 = vunpack.c.h.b16 %v321
    %v369 = vunpack.c.l.b16 %v322
    %v370 = vunpack.c.h.b16 %v322
    %v371 = vpack.c.b16 %v341, %v339
    %v372 = vpack.c.b16 %v342, %v340
    %v373 = vpack.c.b16 %v345, %v343
    %v374 = vpack.c.b16 %v346, %v344
    %v375 = vpack.c.b16 %v349, %v347
    %v376 = vpack.c.b16 %v350, %v348
    %v377 = vpack.c.b16 %v353, %v351
    %v378 = vpack.c.b16 %v354, %v352
    %v379 = vpack.c.b16 %v357, %v355
    %v380 = vpack.c.b16 %v358, %v356
    %v381 = vpack.c.b16 %v361, %v359
    %v382 = vpack.c.b16 %v362, %v360
    %v383 = vpack.c.b16 %v365, %v363
    %v384 = vpack.c.b16 %v366, %v364
    %v385 = vpack.c.b16 %v369, %v367
    %v386 = vpack.c.b16 %v370, %v368
    %403 = vmatprep.subr.bf16.mxu0 %v386
    %404 = vmatpush1.bf16.msra.mxu0 %v385
    %405 = vmatprep.subr.bf16.mxu0 %v384
    %406 = vmatpush1.bf16.msra.mxu0 %v383
    %407 = vmatprep.subr.bf16.mxu0 %v382
    %408 = vmatpush1.bf16.msra.mxu0 %v381
    %409 = vmatprep.subr.bf16.mxu0 %v380
    %410 = vmatpush1.bf16.msra.mxu0 %v379
    %411 = vmatprep.subr.bf16.mxu0 %v378
    %412 = vmatpush1.bf16.msra.mxu0 %v377
    %413 = vmatprep.subr.bf16.mxu0 %v376
    %414 = vmatpush1.bf16.msra.mxu0 %v375
    %415 = vmatprep.subr.bf16.mxu0 %v374
    %416 = vmatpush1.bf16.msra.mxu0 %v373
    %417 = vmatprep.subr.bf16.mxu0 %v372
    %418 = vmatpush1.bf16.msra.mxu0 %v371
    %419 = vmatprep.subr.bf16.mxu0 0
    %420 = vmatpush2.bf16.msra.mxu0 0
    %421 = vmatprep.subr.bf16.mxu0 0
    %422 = vmatpush2.bf16.msra.mxu0 0
    %423 = vmatprep.subr.bf16.mxu0 0
    %424 = vmatpush2.bf16.msra.mxu0 0
    %425 = vmatprep.subr.bf16.mxu0 0
    %426 = vmatpush2.bf16.msra.mxu0 0
    %427 = vmatprep.subr.bf16.mxu0 0
    %428 = vmatpush2.bf16.msra.mxu0 0
    %429 = vmatprep.subr.bf16.mxu0 0
    %430 = vmatpush2.bf16.msra.mxu0 0
    %431 = vmatprep.subr.bf16.mxu0 0
    %432 = vmatpush2.bf16.msra.mxu0 0
    %433 = vmatprep.subr.bf16.mxu0 0
    %434 = vmatpush2.bf16.msra.mxu0 0
    %435 = vmatprep.mubr.bf16.mxu0 0
    %436 = vmatmul.mubr.bf16.gmra.mxu0 %v306
    %v437 = vpop.f32.mrf.mxu0
    %v438 = vadd.f32 0.0, %v437
    %v439 = vpop.f32.mrf.mxu0
    %v440 = vadd.f32 0.0, %v439
    %v441 = vpop.f32.mrf.mxu0
    %v442 = vpop.f32.mrf.mxu0
    %443 = vdwg.mxu0
    %v444 = vsub.f32 0.0, %v438
    %v445 = vsub.f32 0.0, %v440
    %v446 = vmul.f32 %v444, 1.442695
    %v447 = vpow.pop %v446
    %v448 = vmul.f32 %v445, 1.442695
    %v449 = vpow.pop %v448
    %v450 = vadd.f32 %v447, 1.0
    %v451 = vadd.f32 %v449, 1.0
    %v452 = vrcp.pop %v450
    %v453 = vrcp.pop %v451
    %v454 = vld [vmem:[%s7] sm:$0xf]
    %v455 = vld [vmem:[%s7 + $0x4] sm:$0xf]
    %v456 = vld [vmem:[%s7 + $0x8] sm:$0xf]
    %v457 = vld [vmem:[%s7 + $0xc] sm:$0xf]
    %v458 = vld [vmem:[%s7 + $0x10] sm:$0xf]
    %v459 = vld [vmem:[%s7 + $0x14] sm:$0xf]
    %v460 = vld [vmem:[%s7 + $0x18] sm:$0xf]
    %v461 = vld [vmem:[%s7 + $0x1c] sm:$0xf]
    %v462 = vld [vmem:[%s7 + $0x20] sm:$0xf]
    %v463 = vld [vmem:[%s7 + $0x24] sm:$0xf]
    %v464 = vld [vmem:[%s7 + $0x28] sm:$0xf]
    %v465 = vld [vmem:[%s7 + $0x2c] sm:$0xf]
    %v466 = vld [vmem:[%s7 + $0x30] sm:$0xf]
    %v467 = vld [vmem:[%s7 + $0x34] sm:$0xf]
    %v468 = vld [vmem:[%s7 + $0x38] sm:$0xf]
    %v469 = vld [vmem:[%s7 + $0x3c] sm:$0xf]
    %v486 = vunpack.c.l.b16 %v454
    %v487 = vunpack.c.l.b16 %v455
    %v488 = vunpack.c.l.b16 %v456
    %v489 = vunpack.c.l.b16 %v457
    %v490 = vunpack.c.l.b16 %v458
    %v491 = vunpack.c.l.b16 %v459
    %v492 = vunpack.c.l.b16 %v460
    %v493 = vunpack.c.l.b16 %v461
    %v494 = vunpack.c.l.b16 %v462
    %v495 = vunpack.c.l.b16 %v463
    %v496 = vunpack.c.l.b16 %v464
    %v497 = vunpack.c.l.b16 %v465
    %v498 = vunpack.c.l.b16 %v466
    %v499 = vunpack.c.l.b16 %v467
    %v500 = vunpack.c.l.b16 %v468
    %v501 = vunpack.c.l.b16 %v469
    %v502 = vpack.c.b16 %v487, %v486
    %v503 = vpack.c.b16 %v489, %v488
    %v504 = vpack.c.b16 %v491, %v490
    %v505 = vpack.c.b16 %v493, %v492
    %v506 = vpack.c.b16 %v495, %v494
    %v507 = vpack.c.b16 %v497, %v496
    %v508 = vpack.c.b16 %v499, %v498
    %v509 = vpack.c.b16 %v501, %v500
    %518 = vmatprep.subr.bf16.mxu0 0
    %519 = vmatpush1.bf16.msra.mxu0 %v509
    %520 = vmatprep.subr.bf16.mxu0 0
    %521 = vmatpush1.bf16.msra.mxu0 %v508
    %522 = vmatprep.subr.bf16.mxu0 0
    %523 = vmatpush1.bf16.msra.mxu0 %v507
    %524 = vmatprep.subr.bf16.mxu0 0
    %525 = vmatpush1.bf16.msra.mxu0 %v506
    %526 = vmatprep.subr.bf16.mxu0 0
    %527 = vmatpush1.bf16.msra.mxu0 %v505
    %528 = vmatprep.subr.bf16.mxu0 0
    %529 = vmatpush1.bf16.msra.mxu0 %v504
    %530 = vmatprep.subr.bf16.mxu0 0
    %531 = vmatpush1.bf16.msra.mxu0 %v503
    %532 = vmatprep.subr.bf16.mxu0 0
    %533 = vmatpush1.bf16.msra.mxu0 %v502
    %534 = vmatprep.subr.bf16.mxu0 0
    %535 = vmatpush2.bf16.msra.mxu0 0
    %536 = vmatprep.subr.bf16.mxu0 0
    %537 = vmatpush2.bf16.msra.mxu0 0
    %538 = vmatprep.subr.bf16.mxu0 0
    %539 = vmatpush2.bf16.msra.mxu0 0
    %540 = vmatprep.subr.bf16.mxu0 0
    %541 = vmatpush2.bf16.msra.mxu0 0
    %542 = vmatprep.subr.bf16.mxu0 0
    %543 = vmatpush2.bf16.msra.mxu0 0
    %544 = vmatprep.subr.bf16.mxu0 0
    %545 = vmatpush2.bf16.msra.mxu0 0
    %546 = vmatprep.subr.bf16.mxu0 0
    %547 = vmatpush2.bf16.msra.mxu0 0
    %548 = vmatprep.subr.bf16.mxu0 0
    %549 = vmatpush2.bf16.msra.mxu0 0
    %550 = vmatprep.mubr.bf16.mxu0 0
    %551 = vmatmul.mubr.bf16.gmra.mxu0 %v39
    %v552 = vpop.f32.mrf.mxu0
    %v553 = vadd.f32 0.0, %v552
    %v554 = vpop.f32.mrf.mxu0
    %v555 = vpop.f32.mrf.mxu0
    %v556 = vadd.f32 0.0, %v555
    %v557 = vpop.f32.mrf.mxu0
    %558 = vdwg.mxu0
    %s559 = scalar_lea.vmem %s7, 64
    %v560 = vld [vmem:[%s559] sm:$0xf]
    %v561 = vld [vmem:[%s559 + $0x4] sm:$0xf]
    %v562 = vld [vmem:[%s559 + $0x8] sm:$0xf]
    %v563 = vld [vmem:[%s559 + $0xc] sm:$0xf]
    %v564 = vld [vmem:[%s559 + $0x10] sm:$0xf]
    %v565 = vld [vmem:[%s559 + $0x14] sm:$0xf]
    %v566 = vld [vmem:[%s559 + $0x18] sm:$0xf]
    %v567 = vld [vmem:[%s559 + $0x1c] sm:$0xf]
    %v568 = vld [vmem:[%s559 + $0x20] sm:$0xf]
    %v569 = vld [vmem:[%s559 + $0x24] sm:$0xf]
    %v570 = vld [vmem:[%s559 + $0x28] sm:$0xf]
    %v571 = vld [vmem:[%s559 + $0x2c] sm:$0xf]
    %v572 = vld [vmem:[%s559 + $0x30] sm:$0xf]
    %v573 = vld [vmem:[%s559 + $0x34] sm:$0xf]
    %v574 = vld [vmem:[%s559 + $0x38] sm:$0xf]
    %v575 = vld [vmem:[%s559 + $0x3c] sm:$0xf]
    %v592 = vunpack.c.l.b16 %v560
    %v593 = vunpack.c.l.b16 %v561
    %v594 = vunpack.c.l.b16 %v562
    %v595 = vunpack.c.l.b16 %v563
    %v596 = vunpack.c.l.b16 %v564
    %v597 = vunpack.c.l.b16 %v565
    %v598 = vunpack.c.l.b16 %v566
    %v599 = vunpack.c.l.b16 %v567
    %v600 = vunpack.c.l.b16 %v568
    %v601 = vunpack.c.l.b16 %v569
    %v602 = vunpack.c.l.b16 %v570
    %v603 = vunpack.c.l.b16 %v571
    %v604 = vunpack.c.l.b16 %v572
    %v605 = vunpack.c.l.b16 %v573
    %v606 = vunpack.c.l.b16 %v574
    %v607 = vunpack.c.l.b16 %v575
    %v608 = vpack.c.b16 %v593, %v592
    %v609 = vpack.c.b16 %v595, %v594
    %v610 = vpack.c.b16 %v597, %v596
    %v611 = vpack.c.b16 %v599, %v598
    %v612 = vpack.c.b16 %v601, %v600
    %v613 = vpack.c.b16 %v603, %v602
    %v614 = vpack.c.b16 %v605, %v604
    %v615 = vpack.c.b16 %v607, %v606
    %624 = vmatprep.subr.bf16.mxu0 0
    %625 = vmatpush1.bf16.msra.mxu0 %v615
    %626 = vmatprep.subr.bf16.mxu0 0
    %627 = vmatpush1.bf16.msra.mxu0 %v614
    %628 = vmatprep.subr.bf16.mxu0 0
    %629 = vmatpush1.bf16.msra.mxu0 %v613
    %630 = vmatprep.subr.bf16.mxu0 0
    %631 = vmatpush1.bf16.msra.mxu0 %v612
    %632 = vmatprep.subr.bf16.mxu0 0
    %633 = vmatpush1.bf16.msra.mxu0 %v611
    %634 = vmatprep.subr.bf16.mxu0 0
    %635 = vmatpush1.bf16.msra.mxu0 %v610
    %636 = vmatprep.subr.bf16.mxu0 0
    %637 = vmatpush1.bf16.msra.mxu0 %v609
    %638 = vmatprep.subr.bf16.mxu0 0
    %639 = vmatpush1.bf16.msra.mxu0 %v608
    %640 = vmatprep.subr.bf16.mxu0 0
    %641 = vmatpush2.bf16.msra.mxu0 0
    %642 = vmatprep.subr.bf16.mxu0 0
    %643 = vmatpush2.bf16.msra.mxu0 0
    %644 = vmatprep.subr.bf16.mxu0 0
    %645 = vmatpush2.bf16.msra.mxu0 0
    %646 = vmatprep.subr.bf16.mxu0 0
    %647 = vmatpush2.bf16.msra.mxu0 0
    %648 = vmatprep.subr.bf16.mxu0 0
    %649 = vmatpush2.bf16.msra.mxu0 0
    %650 = vmatprep.subr.bf16.mxu0 0
    %651 = vmatpush2.bf16.msra.mxu0 0
    %652 = vmatprep.subr.bf16.mxu0 0
    %653 = vmatpush2.bf16.msra.mxu0 0
    %654 = vmatprep.subr.bf16.mxu0 0
    %655 = vmatpush2.bf16.msra.mxu0 0
    %656 = vmatprep.mubr.bf16.mxu0 0
    %657 = vmatmul.mubr.bf16.gmra.mxu0 %v39
    %v658 = vpop.f32.mrf.mxu0
    %v659 = vadd.f32 0.0, %v658
    %v660 = vpop.f32.mrf.mxu0
    %v661 = vpop.f32.mrf.mxu0
    %v662 = vadd.f32 0.0, %v661
    %v663 = vpop.f32.mrf.mxu0
    %664 = vdwg.mxu0
    %v665 = vmax.f32 %v553, %v659
    %v666 = vmax.f32 %v556, %v662
    %s667 = scalar_lea.vmem %s7, 128
    %v668 = vld [vmem:[%s667] sm:$0xf]
    %v669 = vld [vmem:[%s667 + $0x4] sm:$0xf]
    %v670 = vld [vmem:[%s667 + $0x8] sm:$0xf]
    %v671 = vld [vmem:[%s667 + $0xc] sm:$0xf]
    %v672 = vld [vmem:[%s667 + $0x10] sm:$0xf]
    %v673 = vld [vmem:[%s667 + $0x14] sm:$0xf]
    %v674 = vld [vmem:[%s667 + $0x18] sm:$0xf]
    %v675 = vld [vmem:[%s667 + $0x1c] sm:$0xf]
    %v676 = vld [vmem:[%s667 + $0x20] sm:$0xf]
    %v677 = vld [vmem:[%s667 + $0x24] sm:$0xf]
    %v678 = vld [vmem:[%s667 + $0x28] sm:$0xf]
    %v679 = vld [vmem:[%s667 + $0x2c] sm:$0xf]
    %v680 = vld [vmem:[%s667 + $0x30] sm:$0xf]
    %v681 = vld [vmem:[%s667 + $0x34] sm:$0xf]
    %v682 = vld [vmem:[%s667 + $0x38] sm:$0xf]
    %v683 = vld [vmem:[%s667 + $0x3c] sm:$0xf]
    %v700 = vunpack.c.l.b16 %v668
    %v701 = vunpack.c.l.b16 %v669
    %v702 = vunpack.c.l.b16 %v670
    %v703 = vunpack.c.l.b16 %v671
    %v704 = vunpack.c.l.b16 %v672
    %v705 = vunpack.c.l.b16 %v673
    %v706 = vunpack.c.l.b16 %v674
    %v707 = vunpack.c.l.b16 %v675
    %v708 = vunpack.c.l.b16 %v676
    %v709 = vunpack.c.l.b16 %v677
    %v710 = vunpack.c.l.b16 %v678
    %v711 = vunpack.c.l.b16 %v679
    %v712 = vunpack.c.l.b16 %v680
    %v713 = vunpack.c.l.b16 %v681
    %v714 = vunpack.c.l.b16 %v682
    %v715 = vunpack.c.l.b16 %v683
    %v716 = vpack.c.b16 %v701, %v700
    %v717 = vpack.c.b16 %v703, %v702
    %v718 = vpack.c.b16 %v705, %v704
    %v719 = vpack.c.b16 %v707, %v706
    %v720 = vpack.c.b16 %v709, %v708
    %v721 = vpack.c.b16 %v711, %v710
    %v722 = vpack.c.b16 %v713, %v712
    %v723 = vpack.c.b16 %v715, %v714
    %732 = vmatprep.subr.bf16.mxu0 0
    %733 = vmatpush1.bf16.msra.mxu0 %v723
    %734 = vmatprep.subr.bf16.mxu0 0
    %735 = vmatpush1.bf16.msra.mxu0 %v722
    %736 = vmatprep.subr.bf16.mxu0 0
    %737 = vmatpush1.bf16.msra.mxu0 %v721
    %738 = vmatprep.subr.bf16.mxu0 0
    %739 = vmatpush1.bf16.msra.mxu0 %v720
    %740 = vmatprep.subr.bf16.mxu0 0
    %741 = vmatpush1.bf16.msra.mxu0 %v719
    %742 = vmatprep.subr.bf16.mxu0 0
    %743 = vmatpush1.bf16.msra.mxu0 %v718
    %744 = vmatprep.subr.bf16.mxu0 0
    %745 = vmatpush1.bf16.msra.mxu0 %v717
    %746 = vmatprep.subr.bf16.mxu0 0
    %747 = vmatpush1.bf16.msra.mxu0 %v716
    %748 = vmatprep.subr.bf16.mxu0 0
    %749 = vmatpush2.bf16.msra.mxu0 0
    %750 = vmatprep.subr.bf16.mxu0 0
    %751 = vmatpush2.bf16.msra.mxu0 0
    %752 = vmatprep.subr.bf16.mxu0 0
    %753 = vmatpush2.bf16.msra.mxu0 0
    %754 = vmatprep.subr.bf16.mxu0 0
    %755 = vmatpush2.bf16.msra.mxu0 0
    %756 = vmatprep.subr.bf16.mxu0 0
    %757 = vmatpush2.bf16.msra.mxu0 0
    %758 = vmatprep.subr.bf16.mxu0 0
    %759 = vmatpush2.bf16.msra.mxu0 0
    %760 = vmatprep.subr.bf16.mxu0 0
    %761 = vmatpush2.bf16.msra.mxu0 0
    %762 = vmatprep.subr.bf16.mxu0 0
    %763 = vmatpush2.bf16.msra.mxu0 0
    %764 = vmatprep.mubr.bf16.mxu0 0
    %765 = vmatmul.mubr.bf16.gmra.mxu0 %v39
    %v766 = vpop.f32.mrf.mxu0
    %v767 = vadd.f32 0.0, %v766
    %v768 = vpop.f32.mrf.mxu0
    %v769 = vpop.f32.mrf.mxu0
    %v770 = vadd.f32 0.0, %v769
    %v771 = vpop.f32.mrf.mxu0
    %772 = vdwg.mxu0
    %v773 = vmax.f32 %v665, %v767
    %v774 = vmax.f32 %v666, %v770
    %v775 = vpack.c.bf16 %v774, %v773
    %v776 = vld [vmem:[%s6] sm:$0xf]
    %v777 = vld [vmem:[%s6 + $0x4] sm:$0x7]
    %v780 = vunpack.c.l.b16 %v776
    %v781 = vunpack.c.l.b16 %v777
    %v782 = vpack.c.b16 %v781, %v780
    %vm783 = vcmask 130048
    %v785 = vsel %vm783, %v782, 0
    %787 = vmatprep.subr.bf16.mxu0 0
    %788 = vmatpush1.bf16.msra.mxu0 0
    %789 = vmatprep.subr.bf16.mxu0 0
    %790 = vmatpush1.bf16.msra.mxu0 0
    %791 = vmatprep.subr.bf16.mxu0 0
    %792 = vmatpush1.bf16.msra.mxu0 0
    %793 = vmatprep.subr.bf16.mxu0 0
    %794 = vmatpush1.bf16.msra.mxu0 0
    %795 = vmatprep.subr.bf16.mxu0 0
    %796 = vmatpush1.bf16.msra.mxu0 0
    %797 = vmatprep.subr.bf16.mxu0 0
    %798 = vmatpush1.bf16.msra.mxu0 0
    %799 = vmatprep.subr.bf16.mxu0 0
    %800 = vmatpush1.bf16.msra.mxu0 0
    %801 = vmatprep.subr.bf16.mxu0 0
    %802 = vmatpush1.bf16.msra.mxu0 %v775
    %803 = vmatprep.subr.bf16.mxu0 0
    %804 = vmatpush2.bf16.msra.mxu0 0
    %805 = vmatprep.subr.bf16.mxu0 0
    %806 = vmatpush2.bf16.msra.mxu0 0
    %807 = vmatprep.subr.bf16.mxu0 0
    %808 = vmatpush2.bf16.msra.mxu0 0
    %809 = vmatprep.subr.bf16.mxu0 0
    %810 = vmatpush2.bf16.msra.mxu0 0
    %811 = vmatprep.subr.bf16.mxu0 0
    %812 = vmatpush2.bf16.msra.mxu0 0
    %813 = vmatprep.subr.bf16.mxu0 0
    %814 = vmatpush2.bf16.msra.mxu0 0
    %815 = vmatprep.subr.bf16.mxu0 0
    %816 = vmatpush2.bf16.msra.mxu0 0
    %817 = vmatprep.subr.bf16.mxu0 0
    %818 = vmatpush2.bf16.msra.mxu0 0
    %819 = vmatprep.mubr.bf16.mxu0 0
    %820 = vmatmul.mubr.bf16.gmra.mxu0 %v785
    %v821 = vpop.f32.mrf.mxu0
    %v822 = vadd.f32 0.0, %v821
    %v823 = vpop.f32.mrf.mxu0
    %v824 = vpop.f32.mrf.mxu0
    %v825 = vadd.f32 0.0, %v824
    %v826 = vpop.f32.mrf.mxu0
    %827 = vdwg.mxu0
    %s828 = scalar_lea.vmem %s6, 8
    %v829 = vld [vmem:[%s828] sm:$0xf]
    %v830 = vld [vmem:[%s828 + $0x4] sm:$0x7]
    %v833 = vunpack.c.l.b16 %v829
    %v834 = vunpack.c.l.b16 %v830
    %v835 = vpack.c.b16 %v834, %v833
    %v837 = vsel %vm783, %v835, 0
    %839 = vmatprep.subr.bf16.mxu0 0
    %840 = vmatpush1.bf16.msra.mxu0 0
    %841 = vmatprep.subr.bf16.mxu0 0
    %842 = vmatpush1.bf16.msra.mxu0 0
    %843 = vmatprep.subr.bf16.mxu0 0
    %844 = vmatpush1.bf16.msra.mxu0 0
    %845 = vmatprep.subr.bf16.mxu0 0
    %846 = vmatpush1.bf16.msra.mxu0 0
    %847 = vmatprep.subr.bf16.mxu0 0
    %848 = vmatpush1.bf16.msra.mxu0 0
    %849 = vmatprep.subr.bf16.mxu0 0
    %850 = vmatpush1.bf16.msra.mxu0 0
    %851 = vmatprep.subr.bf16.mxu0 0
    %852 = vmatpush1.bf16.msra.mxu0 0
    %853 = vmatprep.subr.bf16.mxu0 0
    %854 = vmatpush1.bf16.msra.mxu0 %v775
    %855 = vmatprep.subr.bf16.mxu0 0
    %856 = vmatpush2.bf16.msra.mxu0 0
    %857 = vmatprep.subr.bf16.mxu0 0
    %858 = vmatpush2.bf16.msra.mxu0 0
    %859 = vmatprep.subr.bf16.mxu0 0
    %860 = vmatpush2.bf16.msra.mxu0 0
    %861 = vmatprep.subr.bf16.mxu0 0
    %862 = vmatpush2.bf16.msra.mxu0 0
    %863 = vmatprep.subr.bf16.mxu0 0
    %864 = vmatpush2.bf16.msra.mxu0 0
    %865 = vmatprep.subr.bf16.mxu0 0
    %866 = vmatpush2.bf16.msra.mxu0 0
    %867 = vmatprep.subr.bf16.mxu0 0
    %868 = vmatpush2.bf16.msra.mxu0 0
    %869 = vmatprep.subr.bf16.mxu0 0
    %870 = vmatpush2.bf16.msra.mxu0 0
    %871 = vmatprep.mubr.bf16.mxu0 0
    %872 = vmatmul.mubr.bf16.gmra.mxu0 %v837
    %v873 = vpop.f32.mrf.mxu0
    %v874 = vadd.f32 0.0, %v873
    %v875 = vpop.f32.mrf.mxu0
    %v876 = vpop.f32.mrf.mxu0
    %v877 = vadd.f32 0.0, %v876
    %v878 = vpop.f32.mrf.mxu0
    %879 = vdwg.mxu0
    %v880 = vmax.f32 %v822, %v874
    %v881 = vmax.f32 %v825, %v877
    %s882 = scalar_lea.vmem %s6, 16
    %v883 = vld [vmem:[%s882] sm:$0xf]
    %v884 = vld [vmem:[%s882 + $0x4] sm:$0x7]
    %v887 = vunpack.c.l.b16 %v883
    %v888 = vunpack.c.l.b16 %v884
    %v889 = vpack.c.b16 %v888, %v887
    %v891 = vsel %vm783, %v889, 0
    %893 = vmatprep.subr.bf16.mxu0 0
    %894 = vmatpush1.bf16.msra.mxu0 0
    %895 = vmatprep.subr.bf16.mxu0 0
    %896 = vmatpush1.bf16.msra.mxu0 0
    %897 = vmatprep.subr.bf16.mxu0 0
    %898 = vmatpush1.bf16.msra.mxu0 0
    %899 = vmatprep.subr.bf16.mxu0 0
    %900 = vmatpush1.bf16.msra.mxu0 0
    %901 = vmatprep.subr.bf16.mxu0 0
    %902 = vmatpush1.bf16.msra.mxu0 0
    %903 = vmatprep.subr.bf16.mxu0 0
    %904 = vmatpush1.bf16.msra.mxu0 0
    %905 = vmatprep.subr.bf16.mxu0 0
    %906 = vmatpush1.bf16.msra.mxu0 0
    %907 = vmatprep.subr.bf16.mxu0 0
    %908 = vmatpush1.bf16.msra.mxu0 %v775
    %909 = vmatprep.subr.bf16.mxu0 0
    %910 = vmatpush2.bf16.msra.mxu0 0
    %911 = vmatprep.subr.bf16.mxu0 0
    %912 = vmatpush2.bf16.msra.mxu0 0
    %913 = vmatprep.subr.bf16.mxu0 0
    %914 = vmatpush2.bf16.msra.mxu0 0
    %915 = vmatprep.subr.bf16.mxu0 0
    %916 = vmatpush2.bf16.msra.mxu0 0
    %917 = vmatprep.subr.bf16.mxu0 0
    %918 = vmatpush2.bf16.msra.mxu0 0
    %919 = vmatprep.subr.bf16.mxu0 0
    %920 = vmatpush2.bf16.msra.mxu0 0
    %921 = vmatprep.subr.bf16.mxu0 0
    %922 = vmatpush2.bf16.msra.mxu0 0
    %923 = vmatprep.subr.bf16.mxu0 0
    %924 = vmatpush2.bf16.msra.mxu0 0
    %925 = vmatprep.mubr.bf16.mxu0 0
    %926 = vmatmul.mubr.bf16.gmra.mxu0 %v891
    %v927 = vpop.f32.mrf.mxu0
    %v928 = vadd.f32 0.0, %v927
    %v929 = vpop.f32.mrf.mxu0
    %v930 = vpop.f32.mrf.mxu0
    %v931 = vadd.f32 0.0, %v930
    %v932 = vpop.f32.mrf.mxu0
    %933 = vdwg.mxu0
    %v934 = vmax.f32 %v880, %v928
    %v935 = vmax.f32 %v881, %v931
    %936 = vst [vmem:[#allocation2] sm:$0xff] %v934
    %937 = vst [vmem:[#allocation2 + $0x8] sm:$0x3f] %v935
    %v938 = vld [vmem:[#allocation2] sm:$0xff]
    %v939 = vld [vmem:[#allocation2 + $0x8] sm:$0x1]
    %940 = vst [vmem:[#allocation3] sm:$0xff] %v938
    %941 = vst [vmem:[#allocation3 + $0x30] sm:$0x1] %v939
    %v942 = vld [vmem:[#allocation2 + $0x1] sm:$0xff]
    %v943 = vld [vmem:[#allocation2 + $0x9] sm:$0x1]
    %944 = vst [vmem:[#allocation3 + $0x8] sm:$0xff] %v942
    %945 = vst [vmem:[#allocation3 + $0x38] sm:$0x1] %v943
    %v946 = vld [vmem:[#allocation2 + $0x2] sm:$0xff]
    %v947 = vld [vmem:[#allocation2 + $0xa] sm:$0x1]
    %948 = vst [vmem:[#allocation3 + $0x10] sm:$0xff] %v946
    %949 = vst [vmem:[#allocation3 + $0x40] sm:$0x1] %v947
    %v950 = vld [vmem:[#allocation2 + $0x3] sm:$0xff]
    %v951 = vld [vmem:[#allocation2 + $0xb] sm:$0x1]
    %952 = vst [vmem:[#allocation3 + $0x18] sm:$0xff] %v950
    %953 = vst [vmem:[#allocation3 + $0x48] sm:$0x1] %v951
    %v954 = vld [vmem:[#allocation2 + $0x4] sm:$0xff]
    %v955 = vld [vmem:[#allocation2 + $0xc] sm:$0x1]
    %956 = vst [vmem:[#allocation3 + $0x20] sm:$0xff] %v954
    %957 = vst [vmem:[#allocation3 + $0x50] sm:$0x1] %v955
    %v958 = vld [vmem:[#allocation2 + $0x5] sm:$0xff]
    %v959 = vld [vmem:[#allocation2 + $0xd] sm:$0x1]
    %960 = vst [vmem:[#allocation3 + $0x28] sm:$0xff] %v958
    %961 = vst [vmem:[#allocation3 + $0x58] sm:$0x1] %v959
    %v962 = vld [vmem:[#allocation3] sm:$0xff]
    %v963 = vld [vmem:[#allocation3 + $0x8] sm:$0xff]
    %v964 = vld [vmem:[#allocation3 + $0x10] sm:$0xff]
    %v965 = vld [vmem:[#allocation3 + $0x18] sm:$0xff]
    %v966 = vld [vmem:[#allocation3 + $0x20] sm:$0xff]
    %v967 = vld [vmem:[#allocation3 + $0x28] sm:$0xff]
    %v968 = vld [vmem:[#allocation3 + $0x30] sm:$0x1]
    %v969 = vld [vmem:[#allocation3 + $0x38] sm:$0x1]
    %v970 = vld [vmem:[#allocation3 + $0x40] sm:$0x1]
    %v971 = vld [vmem:[#allocation3 + $0x48] sm:$0x1]
    %v972 = vld [vmem:[#allocation3 + $0x50] sm:$0x1]
    %v973 = vld [vmem:[#allocation3 + $0x58] sm:$0x1]
    %v974 = vpack.c.bf16 %v968, %v962
    %v975 = vpack.c.bf16 %v969, %v963
    %v976 = vpack.c.bf16 %v970, %v964
    %v977 = vpack.c.bf16 %v971, %v965
    %v978 = vpack.c.bf16 %v972, %v966
    %v979 = vpack.c.bf16 %v973, %v967
    %v980 = vld [vmem:[%s8] sm:$0xff]
    %v981 = vld [vmem:[%s8 + $0x8] sm:$0xff]
    %v982 = vld [vmem:[%s8 + $0x10] sm:$0xff]
    %v983 = vld [vmem:[%s8 + $0x18] sm:$0xff]
    %v984 = vld [vmem:[%s8 + $0x20] sm:$0xff]
    %v985 = vld [vmem:[%s8 + $0x28] sm:$0xff]
    %v986 = vld [vmem:[%s8 + $0x30] sm:$0xff]
    %v987 = vld [vmem:[%s8 + $0x38] sm:$0xff]
    %v988 = vld [vmem:[%s8 + $0x40] sm:$0xff]
    %v989 = vld [vmem:[%s8 + $0x48] sm:$0xff]
    %v990 = vld [vmem:[%s8 + $0x50] sm:$0xff]
    %v991 = vld [vmem:[%s8 + $0x58] sm:$0xff]
    %v992 = vld [vmem:[%s8 + $0x60] sm:$0xff]
    %v993 = vld [vmem:[%s8 + $0x68] sm:$0xff]
    %v994 = vld [vmem:[%s8 + $0x70] sm:$0xff]
    %v995 = vld [vmem:[%s8 + $0x78] sm:$0xff]
    %v996 = vld [vmem:[%s8 + $0x80] sm:$0xff]
    %v997 = vld [vmem:[%s8 + $0x88] sm:$0xff]
    %v998 = vld [vmem:[%s8 + $0x90] sm:$0xff]
    %v999 = vld [vmem:[%s8 + $0x98] sm:$0xff]
    %v1000 = vld [vmem:[%s8 + $0xa0] sm:$0xff]
    %v1001 = vld [vmem:[%s8 + $0xa8] sm:$0xff]
    %v1002 = vld [vmem:[%s8 + $0xb0] sm:$0xff]
    %v1003 = vld [vmem:[%s8 + $0xb8] sm:$0xff]
    %v1004 = vld [vmem:[%s8 + $0xc0] sm:$0xff]
    %v1005 = vld [vmem:[%s8 + $0xc8] sm:$0xff]
    %v1006 = vld [vmem:[%s8 + $0xd0] sm:$0xff]
    %v1007 = vld [vmem:[%s8 + $0xd8] sm:$0xff]
    %v1008 = vld [vmem:[%s8 + $0xe0] sm:$0xff]
    %v1009 = vld [vmem:[%s8 + $0xe8] sm:$0xff]
    %v1010 = vld [vmem:[%s8 + $0xf0] sm:$0xff]
    %v1011 = vld [vmem:[%s8 + $0xf8] sm:$0xff]
    %v1012 = vld [vmem:[%s8 + $0x100] sm:$0xff]
    %v1013 = vld [vmem:[%s8 + $0x108] sm:$0xff]
    %v1014 = vld [vmem:[%s8 + $0x110] sm:$0xff]
    %v1015 = vld [vmem:[%s8 + $0x118] sm:$0xff]
    %v1016 = vld [vmem:[%s8 + $0x120] sm:$0xff]
    %v1017 = vld [vmem:[%s8 + $0x128] sm:$0xff]
    %v1018 = vld [vmem:[%s8 + $0x130] sm:$0xff]
    %v1019 = vld [vmem:[%s8 + $0x138] sm:$0xff]
    %v1020 = vld [vmem:[%s8 + $0x140] sm:$0xff]
    %v1021 = vld [vmem:[%s8 + $0x148] sm:$0xff]
    %v1022 = vld [vmem:[%s8 + $0x150] sm:$0xff]
    %v1023 = vld [vmem:[%s8 + $0x158] sm:$0xff]
    %v1024 = vld [vmem:[%s8 + $0x160] sm:$0xff]
    %v1025 = vld [vmem:[%s8 + $0x168] sm:$0xff]
    %v1026 = vld [vmem:[%s8 + $0x170] sm:$0xff]
    %v1027 = vld [vmem:[%s8 + $0x178] sm:$0xff]
    %v1028 = vld [vmem:[%s8 + $0x180] sm:$0xff]
    %v1029 = vld [vmem:[%s8 + $0x188] sm:$0xff]
    %v1030 = vld [vmem:[%s8 + $0x190] sm:$0xff]
    %v1031 = vld [vmem:[%s8 + $0x198] sm:$0xff]
    %v1032 = vld [vmem:[%s8 + $0x1a0] sm:$0xff]
    %v1033 = vld [vmem:[%s8 + $0x1a8] sm:$0xff]
    %v1034 = vld [vmem:[%s8 + $0x1b0] sm:$0xff]
    %v1035 = vld [vmem:[%s8 + $0x1b8] sm:$0xff]
    %v1036 = vld [vmem:[%s8 + $0x1c0] sm:$0xff]
    %v1037 = vld [vmem:[%s8 + $0x1c8] sm:$0xff]
    %v1038 = vld [vmem:[%s8 + $0x1d0] sm:$0xff]
    %v1039 = vld [vmem:[%s8 + $0x1d8] sm:$0xff]
    %v1040 = vld [vmem:[%s8 + $0x1e0] sm:$0xff]
    %v1041 = vld [vmem:[%s8 + $0x1e8] sm:$0xff]
    %v1042 = vld [vmem:[%s8 + $0x1f0] sm:$0xff]
    %v1043 = vld [vmem:[%s8 + $0x1f8] sm:$0xff]
    %v1044 = vld [vmem:[%s8 + $0x200] sm:$0xff]
    %v1045 = vld [vmem:[%s8 + $0x208] sm:$0xff]
    %v1046 = vld [vmem:[%s8 + $0x210] sm:$0xff]
    %v1047 = vld [vmem:[%s8 + $0x218] sm:$0xff]
    %v1048 = vld [vmem:[%s8 + $0x220] sm:$0xff]
    %v1049 = vld [vmem:[%s8 + $0x228] sm:$0xff]
    %v1050 = vld [vmem:[%s8 + $0x230] sm:$0xff]
    %v1051 = vld [vmem:[%s8 + $0x238] sm:$0xff]
    %v1052 = vld [vmem:[%s8 + $0x240] sm:$0xff]
    %v1053 = vld [vmem:[%s8 + $0x248] sm:$0xff]
    %v1054 = vld [vmem:[%s8 + $0x250] sm:$0xff]
    %v1055 = vld [vmem:[%s8 + $0x258] sm:$0xff]
    %v1056 = vld [vmem:[%s8 + $0x260] sm:$0xff]
    %v1057 = vld [vmem:[%s8 + $0x268] sm:$0xff]
    %v1058 = vld [vmem:[%s8 + $0x270] sm:$0xff]
    %v1059 = vld [vmem:[%s8 + $0x278] sm:$0xff]
    %v1060 = vld [vmem:[%s8 + $0x280] sm:$0xff]
    %v1061 = vld [vmem:[%s8 + $0x288] sm:$0xff]
    %v1062 = vld [vmem:[%s8 + $0x290] sm:$0xff]
    %v1063 = vld [vmem:[%s8 + $0x298] sm:$0xff]
    %v1064 = vld [vmem:[%s8 + $0x2a0] sm:$0xff]
    %v1065 = vld [vmem:[%s8 + $0x2a8] sm:$0xff]
    %v1066 = vld [vmem:[%s8 + $0x2b0] sm:$0xff]
    %v1067 = vld [vmem:[%s8 + $0x2b8] sm:$0xff]
    %v1068 = vld [vmem:[%s8 + $0x2c0] sm:$0xff]
    %v1069 = vld [vmem:[%s8 + $0x2c8] sm:$0xff]
    %v1070 = vld [vmem:[%s8 + $0x2d0] sm:$0xff]
    %v1071 = vld [vmem:[%s8 + $0x2d8] sm:$0xff]
    %v1072 = vld [vmem:[%s8 + $0x2e0] sm:$0xff]
    %v1073 = vld [vmem:[%s8 + $0x2e8] sm:$0xff]
    %v1074 = vld [vmem:[%s8 + $0x2f0] sm:$0xff]
    %v1075 = vld [vmem:[%s8 + $0x2f8] sm:$0xff]
    %v1076 = vld [vmem:[%s9] sm:$0x3]
    %v1078 = vlaneseq
    %v1079 = vshrl.u32 %v1078, 7
    %v1080 = vsub.s32 0, %v1079
    %v1081 = vrot.slane %v1076, %v1080
    %v1082 = vlaneseq
    %v1083 = vshrl.u32 %v1082, 7
    %v1084 = vsub.s32 1, %v1083
    %v1085 = vrot.slane %v1076, %v1084
    %v1184 = vunpack.c.l.b16 %v980
    %v1185 = vunpack.c.h.b16 %v980
    %v1186 = vunpack.c.l.b16 %v981
    %v1187 = vunpack.c.h.b16 %v981
    %v1188 = vunpack.c.l.b16 %v982
    %v1189 = vunpack.c.h.b16 %v982
    %v1190 = vunpack.c.l.b16 %v983
    %v1191 = vunpack.c.h.b16 %v983
    %v1192 = vunpack.c.l.b16 %v984
    %v1193 = vunpack.c.h.b16 %v984
    %v1194 = vunpack.c.l.b16 %v985
    %v1195 = vunpack.c.h.b16 %v985
    %v1196 = vunpack.c.l.b16 %v986
    %v1197 = vunpack.c.h.b16 %v986
    %v1198 = vunpack.c.l.b16 %v987
    %v1199 = vunpack.c.h.b16 %v987
    %v1200 = vunpack.c.l.b16 %v988
    %v1201 = vunpack.c.h.b16 %v988
    %v1202 = vunpack.c.l.b16 %v989
    %v1203 = vunpack.c.h.b16 %v989
    %v1204 = vunpack.c.l.b16 %v990
    %v1205 = vunpack.c.h.b16 %v990
    %v1206 = vunpack.c.l.b16 %v991
    %v1207 = vunpack.c.h.b16 %v991
    %v1208 = vunpack.c.l.b16 %v992
    %v1209 = vunpack.c.h.b16 %v992
    %v1210 = vunpack.c.l.b16 %v993
    %v1211 = vunpack.c.h.b16 %v993
    %v1212 = vunpack.c.l.b16 %v994
    %v1213 = vunpack.c.h.b16 %v994
    %v1214 = vunpack.c.l.b16 %v995
    %v1215 = vunpack.c.h.b16 %v995
    %v1216 = vunpack.c.l.b16 %v996
    %v1217 = vunpack.c.h.b16 %v996
    %v1218 = vunpack.c.l.b16 %v997
    %v1219 = vunpack.c.h.b16 %v997
    %v1220 = vunpack.c.l.b16 %v998
    %v1221 = vunpack.c.h.b16 %v998
    %v1222 = vunpack.c.l.b16 %v999
    %v1223 = vunpack.c.h.b16 %v999
    %v1224 = vunpack.c.l.b16 %v1000
    %v1225 = vunpack.c.h.b16 %v1000
    %v1226 = vunpack.c.l.b16 %v1001
    %v1227 = vunpack.c.h.b16 %v1001
    %v1228 = vunpack.c.l.b16 %v1002
    %v1229 = vunpack.c.h.b16 %v1002
    %v1230 = vunpack.c.l.b16 %v1003
    %v1231 = vunpack.c.h.b16 %v1003
    %v1232 = vunpack.c.l.b16 %v1004
    %v1233 = vunpack.c.h.b16 %v1004
    %v1234 = vunpack.c.l.b16 %v1005
    %v1235 = vunpack.c.h.b16 %v1005
    %v1236 = vunpack.c.l.b16 %v1006
    %v1237 = vunpack.c.h.b16 %v1006
    %v1238 = vunpack.c.l.b16 %v1007
    %v1239 = vunpack.c.h.b16 %v1007
    %v1240 = vunpack.c.l.b16 %v1008
    %v1241 = vunpack.c.h.b16 %v1008
    %v1242 = vunpack.c.l.b16 %v1009
    %v1243 = vunpack.c.h.b16 %v1009
    %v1244 = vunpack.c.l.b16 %v1010
    %v1245 = vunpack.c.h.b16 %v1010
    %v1246 = vunpack.c.l.b16 %v1011
    %v1247 = vunpack.c.h.b16 %v1011
    %v1248 = vunpack.c.l.b16 %v1012
    %v1249 = vunpack.c.h.b16 %v1012
    %v1250 = vunpack.c.l.b16 %v1013
    %v1251 = vunpack.c.h.b16 %v1013
    %v1252 = vunpack.c.l.b16 %v1014
    %v1253 = vunpack.c.h.b16 %v1014
    %v1254 = vunpack.c.l.b16 %v1015
    %v1255 = vunpack.c.h.b16 %v1015
    %v1256 = vunpack.c.l.b16 %v1016
    %v1257 = vunpack.c.h.b16 %v1016
    %v1258 = vunpack.c.l.b16 %v1017
    %v1259 = vunpack.c.h.b16 %v1017
    %v1260 = vunpack.c.l.b16 %v1018
    %v1261 = vunpack.c.h.b16 %v1018
    %v1262 = vunpack.c.l.b16 %v1019
    %v1263 = vunpack.c.h.b16 %v1019
    %v1264 = vunpack.c.l.b16 %v1020
    %v1265 = vunpack.c.h.b16 %v1020
    %v1266 = vunpack.c.l.b16 %v1021
    %v1267 = vunpack.c.h.b16 %v1021
    %v1268 = vunpack.c.l.b16 %v1022
    %v1269 = vunpack.c.h.b16 %v1022
    %v1270 = vunpack.c.l.b16 %v1023
    %v1271 = vunpack.c.h.b16 %v1023
    %v1272 = vunpack.c.l.b16 %v1024
    %v1273 = vunpack.c.h.b16 %v1024
    %v1274 = vunpack.c.l.b16 %v1025
    %v1275 = vunpack.c.h.b16 %v1025
    %v1276 = vunpack.c.l.b16 %v1026
    %v1277 = vunpack.c.h.b16 %v1026
    %v1278 = vunpack.c.l.b16 %v1027
    %v1279 = vunpack.c.h.b16 %v1027
    %v1280 = vunpack.c.l.b16 %v1028
    %v1281 = vunpack.c.h.b16 %v1028
    %v1282 = vunpack.c.l.b16 %v1029
    %v1283 = vunpack.c.h.b16 %v1029
    %v1284 = vunpack.c.l.b16 %v1030
    %v1285 = vunpack.c.h.b16 %v1030
    %v1286 = vunpack.c.l.b16 %v1031
    %v1287 = vunpack.c.h.b16 %v1031
    %v1288 = vunpack.c.l.b16 %v1032
    %v1289 = vunpack.c.h.b16 %v1032
    %v1290 = vunpack.c.l.b16 %v1033
    %v1291 = vunpack.c.h.b16 %v1033
    %v1292 = vunpack.c.l.b16 %v1034
    %v1293 = vunpack.c.h.b16 %v1034
    %v1294 = vunpack.c.l.b16 %v1035
    %v1295 = vunpack.c.h.b16 %v1035
    %v1296 = vunpack.c.l.b16 %v1036
    %v1297 = vunpack.c.h.b16 %v1036
    %v1298 = vunpack.c.l.b16 %v1037
    %v1299 = vunpack.c.h.b16 %v1037
    %v1300 = vunpack.c.l.b16 %v1038
    %v1301 = vunpack.c.h.b16 %v1038
    %v1302 = vunpack.c.l.b16 %v1039
    %v1303 = vunpack.c.h.b16 %v1039
    %v1304 = vunpack.c.l.b16 %v1040
    %v1305 = vunpack.c.h.b16 %v1040
    %v1306 = vunpack.c.l.b16 %v1041
    %v1307 = vunpack.c.h.b16 %v1041
    %v1308 = vunpack.c.l.b16 %v1042
    %v1309 = vunpack.c.h.b16 %v1042
    %v1310 = vunpack.c.l.b16 %v1043
    %v1311 = vunpack.c.h.b16 %v1043
    %v1312 = vunpack.c.l.b16 %v1044
    %v1313 = vunpack.c.h.b16 %v1044
    %v1314 = vunpack.c.l.b16 %v1045
    %v1315 = vunpack.c.h.b16 %v1045
    %v1316 = vunpack.c.l.b16 %v1046
    %v1317 = vunpack.c.h.b16 %v1046
    %v1318 = vunpack.c.l.b16 %v1047
    %v1319 = vunpack.c.h.b16 %v1047
    %v1320 = vunpack.c.l.b16 %v1048
    %v1321 = vunpack.c.h.b16 %v1048
    %v1322 = vunpack.c.l.b16 %v1049
    %v1323 = vunpack.c.h.b16 %v1049
    %v1324 = vunpack.c.l.b16 %v1050
    %v1325 = vunpack.c.h.b16 %v1050
    %v1326 = vunpack.c.l.b16 %v1051
    %v1327 = vunpack.c.h.b16 %v1051
    %v1328 = vunpack.c.l.b16 %v1052
    %v1329 = vunpack.c.h.b16 %v1052
    %v1330 = vunpack.c.l.b16 %v1053
    %v1331 = vunpack.c.h.b16 %v1053
    %v1332 = vunpack.c.l.b16 %v1054
    %v1333 = vunpack.c.h.b16 %v1054
    %v1334 = vunpack.c.l.b16 %v1055
    %v1335 = vunpack.c.h.b16 %v1055
    %v1336 = vunpack.c.l.b16 %v1056
    %v1337 = vunpack.c.h.b16 %v1056
    %v1338 = vunpack.c.l.b16 %v1057
    %v1339 = vunpack.c.h.b16 %v1057
    %v1340 = vunpack.c.l.b16 %v1058
    %v1341 = vunpack.c.h.b16 %v1058
    %v1342 = vunpack.c.l.b16 %v1059
    %v1343 = vunpack.c.h.b16 %v1059
    %v1344 = vunpack.c.l.b16 %v1060
    %v1345 = vunpack.c.h.b16 %v1060
    %v1346 = vunpack.c.l.b16 %v1061
    %v1347 = vunpack.c.h.b16 %v1061
    %v1348 = vunpack.c.l.b16 %v1062
    %v1349 = vunpack.c.h.b16 %v1062
    %v1350 = vunpack.c.l.b16 %v1063
    %v1351 = vunpack.c.h.b16 %v1063
    %v1352 = vunpack.c.l.b16 %v1064
    %v1353 = vunpack.c.h.b16 %v1064
    %v1354 = vunpack.c.l.b16 %v1065
    %v1355 = vunpack.c.h.b16 %v1065
    %v1356 = vunpack.c.l.b16 %v1066
    %v1357 = vunpack.c.h.b16 %v1066
    %v1358 = vunpack.c.l.b16 %v1067
    %v1359 = vunpack.c.h.b16 %v1067
    %v1360 = vunpack.c.l.b16 %v1068
    %v1361 = vunpack.c.h.b16 %v1068
    %v1362 = vunpack.c.l.b16 %v1069
    %v1363 = vunpack.c.h.b16 %v1069
    %v1364 = vunpack.c.l.b16 %v1070
    %v1365 = vunpack.c.h.b16 %v1070
    %v1366 = vunpack.c.l.b16 %v1071
    %v1367 = vunpack.c.h.b16 %v1071
    %v1368 = vunpack.c.l.b16 %v1072
    %v1369 = vunpack.c.h.b16 %v1072
    %v1370 = vunpack.c.l.b16 %v1073
    %v1371 = vunpack.c.h.b16 %v1073
    %v1372 = vunpack.c.l.b16 %v1074
    %v1373 = vunpack.c.h.b16 %v1074
    %v1374 = vunpack.c.l.b16 %v1075
    %v1375 = vunpack.c.h.b16 %v1075
    %v1376 = vpack.c.b16 %v1186, %v1184
    %v1377 = vpack.c.b16 %v1187, %v1185
    %v1378 = vpack.c.b16 %v1190, %v1188
    %v1379 = vpack.c.b16 %v1191, %v1189
    %v1380 = vpack.c.b16 %v1194, %v1192
    %v1381 = vpack.c.b16 %v1195, %v1193
    %v1382 = vpack.c.b16 %v1198, %v1196
    %v1383 = vpack.c.b16 %v1199, %v1197
    %v1384 = vpack.c.b16 %v1202, %v1200
    %v1385 = vpack.c.b16 %v1203, %v1201
    %v1386 = vpack.c.b16 %v1206, %v1204
    %v1387 = vpack.c.b16 %v1207, %v1205
    %v1388 = vpack.c.b16 %v1210, %v1208
    %v1389 = vpack.c.b16 %v1211, %v1209
    %v1390 = vpack.c.b16 %v1214, %v1212
    %v1391 = vpack.c.b16 %v1215, %v1213
    %v1392 = vpack.c.b16 %v1218, %v1216
    %v1393 = vpack.c.b16 %v1219, %v1217
    %v1394 = vpack.c.b16 %v1222, %v1220
    %v1395 = vpack.c.b16 %v1223, %v1221
    %v1396 = vpack.c.b16 %v1226, %v1224
    %v1397 = vpack.c.b16 %v1227, %v1225
    %v1398 = vpack.c.b16 %v1230, %v1228
    %v1399 = vpack.c.b16 %v1231, %v1229
    %v1400 = vpack.c.b16 %v1234, %v1232
    %v1401 = vpack.c.b16 %v1235, %v1233
    %v1402 = vpack.c.b16 %v1238, %v1236
    %v1403 = vpack.c.b16 %v1239, %v1237
    %v1404 = vpack.c.b16 %v1242, %v1240
    %v1405 = vpack.c.b16 %v1243, %v1241
    %v1406 = vpack.c.b16 %v1246, %v1244
    %v1407 = vpack.c.b16 %v1247, %v1245
    %v1408 = vpack.c.b16 %v1250, %v1248
    %v1409 = vpack.c.b16 %v1251, %v1249
    %v1410 = vpack.c.b16 %v1254, %v1252
    %v1411 = vpack.c.b16 %v1255, %v1253
    %v1412 = vpack.c.b16 %v1258, %v1256
    %v1413 = vpack.c.b16 %v1259, %v1257
    %v1414 = vpack.c.b16 %v1262, %v1260
    %v1415 = vpack.c.b16 %v1263, %v1261
    %v1416 = vpack.c.b16 %v1266, %v1264
    %v1417 = vpack.c.b16 %v1267, %v1265
    %v1418 = vpack.c.b16 %v1270, %v1268
    %v1419 = vpack.c.b16 %v1271, %v1269
    %v1420 = vpack.c.b16 %v1274, %v1272
    %v1421 = vpack.c.b16 %v1275, %v1273
    %v1422 = vpack.c.b16 %v1278, %v1276
    %v1423 = vpack.c.b16 %v1279, %v1277
    %v1424 = vpack.c.b16 %v1282, %v1280
    %v1425 = vpack.c.b16 %v1283, %v1281
    %v1426 = vpack.c.b16 %v1286, %v1284
    %v1427 = vpack.c.b16 %v1287, %v1285
    %v1428 = vpack.c.b16 %v1290, %v1288
    %v1429 = vpack.c.b16 %v1291, %v1289
    %v1430 = vpack.c.b16 %v1294, %v1292
    %v1431 = vpack.c.b16 %v1295, %v1293
    %v1432 = vpack.c.b16 %v1298, %v1296
    %v1433 = vpack.c.b16 %v1299, %v1297
    %v1434 = vpack.c.b16 %v1302, %v1300
    %v1435 = vpack.c.b16 %v1303, %v1301
    %v1436 = vpack.c.b16 %v1306, %v1304
    %v1437 = vpack.c.b16 %v1307, %v1305
    %v1438 = vpack.c.b16 %v1310, %v1308
    %v1439 = vpack.c.b16 %v1311, %v1309
    %v1440 = vpack.c.b16 %v1314, %v1312
    %v1441 = vpack.c.b16 %v1315, %v1313
    %v1442 = vpack.c.b16 %v1318, %v1316
    %v1443 = vpack.c.b16 %v1319, %v1317
    %v1444 = vpack.c.b16 %v1322, %v1320
    %v1445 = vpack.c.b16 %v1323, %v1321
    %v1446 = vpack.c.b16 %v1326, %v1324
    %v1447 = vpack.c.b16 %v1327, %v1325
    %v1448 = vpack.c.b16 %v1330, %v1328
    %v1449 = vpack.c.b16 %v1331, %v1329
    %v1450 = vpack.c.b16 %v1334, %v1332
    %v1451 = vpack.c.b16 %v1335, %v1333
    %v1452 = vpack.c.b16 %v1338, %v1336
    %v1453 = vpack.c.b16 %v1339, %v1337
    %v1454 = vpack.c.b16 %v1342, %v1340
    %v1455 = vpack.c.b16 %v1343, %v1341
    %v1456 = vpack.c.b16 %v1346, %v1344
    %v1457 = vpack.c.b16 %v1347, %v1345
    %v1458 = vpack.c.b16 %v1350, %v1348
    %v1459 = vpack.c.b16 %v1351, %v1349
    %v1460 = vpack.c.b16 %v1354, %v1352
    %v1461 = vpack.c.b16 %v1355, %v1353
    %v1462 = vpack.c.b16 %v1358, %v1356
    %v1463 = vpack.c.b16 %v1359, %v1357
    %v1464 = vpack.c.b16 %v1362, %v1360
    %v1465 = vpack.c.b16 %v1363, %v1361
    %v1466 = vpack.c.b16 %v1366, %v1364
    %v1467 = vpack.c.b16 %v1367, %v1365
    %v1468 = vpack.c.b16 %v1370, %v1368
    %v1469 = vpack.c.b16 %v1371, %v1369
    %v1470 = vpack.c.b16 %v1374, %v1372
    %v1471 = vpack.c.b16 %v1375, %v1373
    %1568 = vmatprep.subr.bf16.mxu0 %v1391
    %1569 = vmatpush1.bf16.msra.mxu0 %v1390
    %1570 = vmatprep.subr.bf16.mxu0 %v1389
    %1571 = vmatpush1.bf16.msra.mxu0 %v1388
    %1572 = vmatprep.subr.bf16.mxu0 %v1387
    %1573 = vmatpush1.bf16.msra.mxu0 %v1386
    %1574 = vmatprep.subr.bf16.mxu0 %v1385
    %1575 = vmatpush1.bf16.msra.mxu0 %v1384
    %1576 = vmatprep.subr.bf16.mxu0 %v1383
    %1577 = vmatpush1.bf16.msra.mxu0 %v1382
    %1578 = vmatprep.subr.bf16.mxu0 %v1381
    %1579 = vmatpush1.bf16.msra.mxu0 %v1380
    %1580 = vmatprep.subr.bf16.mxu0 %v1379
    %1581 = vmatpush1.bf16.msra.mxu0 %v1378
    %1582 = vmatprep.subr.bf16.mxu0 %v1377
    %1583 = vmatpush1.bf16.msra.mxu0 %v1376
    %1584 = vmatprep.subr.bf16.mxu0 %v1407
    %1585 = vmatpush2.bf16.msra.mxu0 %v1406
    %1586 = vmatprep.subr.bf16.mxu0 %v1405
    %1587 = vmatpush2.bf16.msra.mxu0 %v1404
    %1588 = vmatprep.subr.bf16.mxu0 %v1403
    %1589 = vmatpush2.bf16.msra.mxu0 %v1402
    %1590 = vmatprep.subr.bf16.mxu0 %v1401
    %1591 = vmatpush2.bf16.msra.mxu0 %v1400
    %1592 = vmatprep.subr.bf16.mxu0 %v1399
    %1593 = vmatpush2.bf16.msra.mxu0 %v1398
    %1594 = vmatprep.subr.bf16.mxu0 %v1397
    %1595 = vmatpush2.bf16.msra.mxu0 %v1396
    %1596 = vmatprep.subr.bf16.mxu0 %v1395
    %1597 = vmatpush2.bf16.msra.mxu0 %v1394
    %1598 = vmatprep.subr.bf16.mxu0 %v1393
    %1599 = vmatpush2.bf16.msra.mxu0 %v1392
    %1600 = vmatprep.mubr.bf16.mxu0 %v975
    %1601 = vmatmul.mubr.bf16.gmra.mxu0 %v974
    %v1602 = vpop.f32.mrf.mxu0
    %v1603 = vadd.f32 %v1081, %v1602
    %v1604 = vpop.f32.mrf.mxu0
    %v1605 = vadd.f32 %v1085, %v1604
    %v1606 = vpop.f32.mrf.mxu0
    %v1607 = vadd.f32 %v1081, %v1606
    %v1608 = vpop.f32.mrf.mxu0
    %v1609 = vadd.f32 %v1085, %v1608
    %1610 = vdwg.mxu0
    %1611 = vmatprep.subr.bf16.mxu0 %v1423
    %1612 = vmatpush1.bf16.msra.mxu0 %v1422
    %1613 = vmatprep.subr.bf16.mxu0 %v1421
    %1614 = vmatpush1.bf16.msra.mxu0 %v1420
    %1615 = vmatprep.subr.bf16.mxu0 %v1419
    %1616 = vmatpush1.bf16.msra.mxu0 %v1418
    %1617 = vmatprep.subr.bf16.mxu0 %v1417
    %1618 = vmatpush1.bf16.msra.mxu0 %v1416
    %1619 = vmatprep.subr.bf16.mxu0 %v1415
    %1620 = vmatpush1.bf16.msra.mxu0 %v1414
    %1621 = vmatprep.subr.bf16.mxu0 %v1413
    %1622 = vmatpush1.bf16.msra.mxu0 %v1412
    %1623 = vmatprep.subr.bf16.mxu0 %v1411
    %1624 = vmatpush1.bf16.msra.mxu0 %v1410
    %1625 = vmatprep.subr.bf16.mxu0 %v1409
    %1626 = vmatpush1.bf16.msra.mxu0 %v1408
    %1627 = vmatprep.subr.bf16.mxu0 %v1439
    %1628 = vmatpush2.bf16.msra.mxu0 %v1438
    %1629 = vmatprep.subr.bf16.mxu0 %v1437
    %1630 = vmatpush2.bf16.msra.mxu0 %v1436
    %1631 = vmatprep.subr.bf16.mxu0 %v1435
    %1632 = vmatpush2.bf16.msra.mxu0 %v1434
    %1633 = vmatprep.subr.bf16.mxu0 %v1433
    %1634 = vmatpush2.bf16.msra.mxu0 %v1432
    %1635 = vmatprep.subr.bf16.mxu0 %v1431
    %1636 = vmatpush2.bf16.msra.mxu0 %v1430
    %1637 = vmatprep.subr.bf16.mxu0 %v1429
    %1638 = vmatpush2.bf16.msra.mxu0 %v1428
    %1639 = vmatprep.subr.bf16.mxu0 %v1427
    %1640 = vmatpush2.bf16.msra.mxu0 %v1426
    %1641 = vmatprep.subr.bf16.mxu0 %v1425
    %1642 = vmatpush2.bf16.msra.mxu0 %v1424
    %1643 = vmatprep.mubr.bf16.mxu0 %v977
    %1644 = vmatmul.mubr.bf16.gmra.mxu0 %v976
    %v1645 = vpop.f32.mrf.mxu0
    %v1646 = vadd.f32 %v1603, %v1645
    %v1647 = vpop.f32.mrf.mxu0
    %v1648 = vadd.f32 %v1605, %v1647
    %v1649 = vpop.f32.mrf.mxu0
    %v1650 = vadd.f32 %v1607, %v1649
    %v1651 = vpop.f32.mrf.mxu0
    %v1652 = vadd.f32 %v1609, %v1651
    %1653 = vdwg.mxu0
    %1654 = vmatprep.subr.bf16.mxu0 %v1455
    %1655 = vmatpush1.bf16.msra.mxu0 %v1454
    %1656 = vmatprep.subr.bf16.mxu0 %v1453
    %1657 = vmatpush1.bf16.msra.mxu0 %v1452
    %1658 = vmatprep.subr.bf16.mxu0 %v1451
    %1659 = vmatpush1.bf16.msra.mxu0 %v1450
    %1660 = vmatprep.subr.bf16.mxu0 %v1449
    %1661 = vmatpush1.bf16.msra.mxu0 %v1448
    %1662 = vmatprep.subr.bf16.mxu0 %v1447
    %1663 = vmatpush1.bf16.msra.mxu0 %v1446
    %1664 = vmatprep.subr.bf16.mxu0 %v1445
    %1665 = vmatpush1.bf16.msra.mxu0 %v1444
    %1666 = vmatprep.subr.bf16.mxu0 %v1443
    %1667 = vmatpush1.bf16.msra.mxu0 %v1442
    %1668 = vmatprep.subr.bf16.mxu0 %v1441
    %1669 = vmatpush1.bf16.msra.mxu0 %v1440
    %1670 = vmatprep.subr.bf16.mxu0 %v1471
    %1671 = vmatpush2.bf16.msra.mxu0 %v1470
    %1672 = vmatprep.subr.bf16.mxu0 %v1469
    %1673 = vmatpush2.bf16.msra.mxu0 %v1468
    %1674 = vmatprep.subr.bf16.mxu0 %v1467
    %1675 = vmatpush2.bf16.msra.mxu0 %v1466
    %1676 = vmatprep.subr.bf16.mxu0 %v1465
    %1677 = vmatpush2.bf16.msra.mxu0 %v1464
    %1678 = vmatprep.subr.bf16.mxu0 %v1463
    %1679 = vmatpush2.bf16.msra.mxu0 %v1462
    %1680 = vmatprep.subr.bf16.mxu0 %v1461
    %1681 = vmatpush2.bf16.msra.mxu0 %v1460
    %1682 = vmatprep.subr.bf16.mxu0 %v1459
    %1683 = vmatpush2.bf16.msra.mxu0 %v1458
    %1684 = vmatprep.subr.bf16.mxu0 %v1457
    %1685 = vmatpush2.bf16.msra.mxu0 %v1456
    %1686 = vmatprep.mubr.bf16.mxu0 %v979
    %1687 = vmatmul.mubr.bf16.gmra.mxu0 %v978
    %v1688 = vpop.f32.mrf.mxu0
    %v1689 = vadd.f32 %v1646, %v1688
    %v1690 = vpop.f32.mrf.mxu0
    %v1691 = vadd.f32 %v1648, %v1690
    %v1692 = vpop.f32.mrf.mxu0
    %v1693 = vadd.f32 %v1650, %v1692
    %v1694 = vpop.f32.mrf.mxu0
    %v1695 = vadd.f32 %v1652, %v1694
    %1696 = vdwg.mxu0
    %v1697 = vlaneseq
    %v1698 = vshrl.u32 %v1697, 7
    %v1699 = vsub.s32 0, %v1698
    %v1700 = vrot.slane %v452, %v1699
    %v1701 = vlaneseq
    %v1702 = vshrl.u32 %v1701, 7
    %v1703 = vsub.s32 0, %v1702
    %v1704 = vrot.slane %v453, %v1703
    %v1705 = vmul.f32 %v1689, %v1700
    %v1706 = vmul.f32 %v1691, %v1704
    %v1707 = vmul.f32 %v1693, %v1700
    %v1708 = vmul.f32 %v1695, %v1704
    %v1709 = vmax.f32 %v1705, 0.0
    %v1710 = vmax.f32 %v1706, 0.0
    %v1711 = vmax.f32 %v1707, 0.0
    %v1712 = vmax.f32 %v1708, 0.0
    %1713 = vst [vmem:[#allocation4] sm:$0xff] %v1709
    %1714 = vst.msk [vmem:[#allocation4 + $0x8] sm:$0xff] %vm783, %v1710
    %1715 = vst [vmem:[#allocation4 + $0x10] sm:$0x1] %v1711
    %vm1716 = vcmask 122880
    %1717 = vst.msk [vmem:[#allocation4 + $0x18] sm:$0x1] %vm1716, %v1712
    // Predicated region
    $region42: #{tpu_custom_call.1} parent=1 // pred_check
      _
    $region43: #{tpu_custom_call.1} parent=1 // pred_check_branch
      %1719 = sbr.rel (0) target = $region45
    $region44: #{tpu_custom_call.1} parent=1 // pred_region
      %s1721 = ssub.s32 512, 512
      %1722 = vsyncadd [#allocation5], %s1721
      %s1723 = sshll.u32 [#allocation4], 4
      %s1724 = int_to_ptr.vmem [resolvable:$true] %s1723
      %1729 = dma.vmem_to_hbm [thread:$0]  %s1724, 512, %s10, [#allocation5], 256, 256, 16
    $region45: #{tpu_custom_call.1} parent=1 // pred_fallthru
      _
    // Predicated region
    $region46: #{tpu_custom_call.1} parent=1 // pred_check
      _
    $region47: #{tpu_custom_call.1} parent=1 // pred_check_branch
      %1731 = sbr.rel (0) target = $region49
    $region48: #{tpu_custom_call.1} parent=1 // pred_region
      %1732 = dma.done [#allocation5], 512
    $region49: #{tpu_custom_call.1} parent=1 // pred_fallthru
      _
    %1733 = vsyncpa [#allocation5], 1

</llo_original>
